<compile_context>
chip_gen: v7x
topology: tpu7x:2x2x1
jax: 0.10.0
libtpu: 0.0.40
codegen_flags: <defaults>
</compile_context>

<pallas_src>
import jax
import jax.numpy as jnp
from jax.experimental import pallas as pl
from jax.experimental.pallas import tpu as pltpu

# ---- small synthetic CLIP-text config ----
S = 8          # model_max_length (real CLIP uses 77 -> pad to 128 at real size)
D = 128        # hidden size (real SD1.5 CLIP uses 768)
H = 4          # attention heads
DH = D // H    # head dim
M = 4 * D      # MLP intermediate
LAYERS = 2     # encoder layers (real: 12)
VOCAB = 1000
EPS = 1e-5


def _layernorm(x, w, b):
    mu = jnp.mean(x, axis=-1, keepdims=True)
    var = jnp.mean((x - mu) ** 2, axis=-1, keepdims=True)
    return (x - mu) * jax.lax.rsqrt(var + EPS) * w + b


def clip_encoder_kernel(x0_ref, mask_ref, fln_ref, small_ref,
                        wqkv_ref, bqkv_ref, wo_ref,
                        w1_ref, b1_ref, w2_ref,
                        out_ref, x_scr):
    layer = pl.program_id(0)

    # Load the embedded tokens into the resident VMEM residual stream once.
    @pl.when(layer == 0)
    def _():
        x_scr[...] = x0_ref[...]

    x = x_scr[...]                                   # (S, D) f32 residual

    small = small_ref[...]                           # (6, D) packed f32 params
    ln1_w, ln1_b = small[0:1, :], small[1:2, :]
    ln2_w, ln2_b = small[2:3, :], small[3:4, :]
    bo, b2 = small[4:5, :], small[5:6, :]
    mask = mask_ref[...]                             # (S, S) causal additive mask

    # ---------------- self-attention block (pre-LN, causal) ----------------
    h = _layernorm(x, ln1_w, ln1_b).astype(jnp.bfloat16)              # (S, D)
    # Fused QKV: one lane-dense MXU op.  1/sqrt(DH) pre-folded into Q cols.
    qkv = jnp.dot(h, wqkv_ref[...],
                  preferred_element_type=jnp.float32) + bqkv_ref[...]  # (S, 3D)
    q_all = qkv[:, :D]
    k_all = qkv[:, D:2 * D]
    v_all = qkv[:, 2 * D:]

    # Per-head scores / context (tiny at S=8, DH=32); static unrolled loop.
    ctx_heads = []
    for hh in range(H):
        lo, hi = hh * DH, (hh + 1) * DH
        qh = q_all[:, lo:hi]                         # (S, DH)
        kh = k_all[:, lo:hi]
        vh = v_all[:, lo:hi]
        s = jax.lax.dot_general(qh, kh, (((1,), (1,)), ((), ())),
                                preferred_element_type=jnp.float32) + mask
        s = s - jnp.max(s, axis=-1, keepdims=True)
        p = jnp.exp(s)
        p = p * pl.reciprocal(jnp.sum(p, axis=-1, keepdims=True), approx=True)
        ctx_heads.append(jnp.dot(p, vh, preferred_element_type=jnp.float32))

    ctx = jnp.concatenate(ctx_heads, axis=-1)        # (S, H*DH) = (S, D)
    # Fused output projection: single K=128 lane-dense MXU op.
    attn = jnp.dot(ctx.astype(jnp.bfloat16), wo_ref[...],
                   preferred_element_type=jnp.float32) + bo
    x = x + attn                                     # residual

    # ---------------- MLP block (quick-GELU) ----------------
    h2 = _layernorm(x, ln2_w, ln2_b).astype(jnp.bfloat16)
    g = jnp.dot(h2, w1_ref[...],
                preferred_element_type=jnp.float32) + b1_ref[...]
    g = g * jax.nn.sigmoid(1.702 * g)                # CLIP quick_gelu, f32 VPU/EUP
    m = jnp.dot(g.astype(jnp.bfloat16), w2_ref[...],
                preferred_element_type=jnp.float32) + b2
    x = x + m                                        # residual

    x_scr[...] = x

    # fused final LayerNorm; single HBM writeback of the output block
    @pl.when(layer == pl.num_programs(0) - 1)
    def _():
        fln = fln_ref[...]                           # (2, D): [weight; bias]
        out_ref[...] = _layernorm(x, fln[0:1, :], fln[1:2, :])


def _stacked_spec(shape_tail):
    """Per-layer tensor stacked on a leading LAYERS axis; squeezed in-kernel."""
    nd = len(shape_tail)
    return pl.BlockSpec((pl.Squeezed(),) + tuple(shape_tail),
                        lambda l, nd=nd: (l,) + (0,) * nd)


def _fixed_spec(shape):
    """Layer-invariant tensor: same block every grid step (stays VMEM-resident)."""
    nd = len(shape)
    return pl.BlockSpec(tuple(shape), lambda l, nd=nd: (0,) * nd)


def clip_text_encoder(x0, p):
    inputs = (
        x0, p["causal_mask"], p["final_ln"], p["small"],
        p["wqkv"], p["bqkv"], p["wo"],
        p["w1"], p["b1"], p["w2"],
    )
    in_specs = [
        _fixed_spec((S, D)),            # embedded tokens
        _fixed_spec((S, S)),            # causal mask
        _fixed_spec((2, D)),            # final LN [w; b]
        _stacked_spec((6, D)),          # packed ln1 w/b, ln2 w/b, bo, b2
        _stacked_spec((D, 3 * D)),      # fused wqkv (bf16)
        _stacked_spec((1, 3 * D)),      # fused bqkv
        _stacked_spec((D, D)),          # wo (bf16)
        _stacked_spec((D, M)),          # w1 (bf16)
        _stacked_spec((1, M)),          # b1
        _stacked_spec((M, D)),          # w2 (bf16)
    ]
    return pl.pallas_call(
        clip_encoder_kernel,
        out_shape=jax.ShapeDtypeStruct((S, D), jnp.float32),
        grid_spec=pltpu.PrefetchScalarGridSpec(
            num_scalar_prefetch=0,
            grid=(LAYERS,),
            in_specs=in_specs,
            out_specs=_fixed_spec((S, D)),
            scratch_shapes=[pltpu.VMEM((S, D), jnp.float32)],  # residual stream
        ),
        compiler_params=pltpu.CompilerParams(
            dimension_semantics=("arbitrary",),     # layer-carried dependence
            # Safe on all chips at this size.  At real CLIP size (~14 MB bf16
            # weights/layer, double-buffered): raise on v5e (>16 MiB default),
            # keep <= ~48 MiB and Buffered(2) on v7x (64 MiB physical VMEM).
            vmem_limit_bytes=32 * 1024 * 1024,
        ),
    )(*inputs)


def annotator_forward(token_ids, params):
    """Equivalent of Annotator.forward: returns (S, D) prompt embeddings."""
    # glue: embedding lookup + position embedding (batch=1, squeezed)
    x = jnp.take(params["tok_emb"], token_ids, axis=0) + params["pos_emb"]
    return clip_text_encoder(x.astype(jnp.float32), params)


def init_params(key):
    """Deterministic synthetic CLIPTextModel weights (stacked per layer)."""
    keys = iter(jax.random.split(key, 128))
    std = 0.02
    scale = DH ** -0.5

    def nrm(shape):
        return (std * jax.random.normal(next(keys), shape)).astype(jnp.float32)

    row = jnp.arange(S)[:, None]
    col = jnp.arange(S)[None, :]
    causal = jnp.where(col <= row, 0.0, -1e9).astype(jnp.float32)

    wqkv_l, bqkv_l, wo_l, w1_l, b1_l, w2_l, small_l = [], [], [], [], [], [], []
    for _ in range(LAYERS):
        # fold 1/sqrt(DH) into the Q projection at init (bit-equivalent)
        wq, bq = nrm((D, D)) * scale, nrm((D,)) * scale
        wk, bk = nrm((D, D)), nrm((D,))
        wv, bv = nrm((D, D)), nrm((D,))
        wqkv_l.append(jnp.concatenate([wq, wk, wv], axis=1))             # (D, 3D)
        bqkv_l.append(jnp.concatenate([bq, bk, bv]).reshape(1, 3 * D))
        wo_l.append(nrm((D, D)))
        bo = nrm((D,))
        w1_l.append(nrm((D, M)))
        b1_l.append(nrm((M,)).reshape(1, M))
        w2_l.append(nrm((M, D)))
        b2 = nrm((D,))
        small_l.append(jnp.stack([jnp.ones((D,), jnp.float32),    # ln1_w
                                  jnp.zeros((D,), jnp.float32),   # ln1_b
                                  jnp.ones((D,), jnp.float32),    # ln2_w
                                  jnp.zeros((D,), jnp.float32),   # ln2_b
                                  bo, b2], axis=0))               # (6, D)

    return {
        "tok_emb": nrm((VOCAB, D)),
        "pos_emb": nrm((S, D)),
        "final_ln": jnp.stack([jnp.ones((D,), jnp.float32),
                               jnp.zeros((D,), jnp.float32)], axis=0),   # (2, D)
        "causal_mask": causal,
        "wqkv": jnp.stack(wqkv_l).astype(jnp.bfloat16),   # (L, D, 3D)
        "bqkv": jnp.stack(bqkv_l),                        # (L, 1, 3D) f32
        "wo": jnp.stack(wo_l).astype(jnp.bfloat16),       # (L, D, D)
        "w1": jnp.stack(w1_l).astype(jnp.bfloat16),       # (L, D, M)
        "b1": jnp.stack(b1_l),                            # (L, 1, M) f32
        "w2": jnp.stack(w2_l).astype(jnp.bfloat16),       # (L, M, D)
        "small": jnp.stack(small_l),                      # (L, 6, D) f32
    }


def reference_forward(token_ids, p):
    """Pure-JAX reference mirroring the kernel's mixed precision."""
    def bf(x):  # emulate the bf16 rounding of MXU inputs used in the kernel
        return x.astype(jnp.bfloat16).astype(jnp.float32)

    x = jnp.take(p["tok_emb"], token_ids, axis=0) + p["pos_emb"]
    x = x.astype(jnp.float32)
    mask = p["causal_mask"]
    for l in range(LAYERS):
        sm = p["small"][l]
        ln1_w, ln1_b, ln2_w, ln2_b, bo, b2 = (sm[i] for i in range(6))
        h = bf(_layernorm(x, ln1_w, ln1_b))
        qkv = h @ p["wqkv"][l].astype(jnp.float32) + p["bqkv"][l]
        ctx = []
        for hh in range(H):
            lo, hi = hh * DH, (hh + 1) * DH
            q = qkv[:, lo:hi]
            k = qkv[:, D + lo:D + hi]
            v = qkv[:, 2 * D + lo:2 * D + hi]
            s = q @ k.T + mask
            ctx.append(jax.nn.softmax(s, axis=-1) @ v)
        ctx = bf(jnp.concatenate(ctx, axis=-1))
        attn = ctx @ p["wo"][l].astype(jnp.float32) + bo
        x = x + attn
        h2 = bf(_layernorm(x, ln2_w, ln2_b))
        g = h2 @ p["w1"][l].astype(jnp.float32) + p["b1"][l]
        g = g * jax.nn.sigmoid(1.702 * g)
        x = x + bf(g) @ p["w2"][l].astype(jnp.float32) + b2
    return _layernorm(x, p["final_ln"][0], p["final_ln"][1])


if __name__ == "__main__":
    key = jax.random.PRNGKey(0)
    k_param, k_ids = jax.random.split(key)
    params = init_params(k_param)
    # TODO(synk): real path tokenizes a string prompt; synthetic ids used here.
    token_ids = jax.random.randint(k_ids, (S,), 0, VOCAB, dtype=jnp.int32)

    out = annotator_forward(token_ids, params)
    out = jax.block_until_ready(out)
    assert out.shape == (S, D) and out.dtype == jnp.float32

    ref = reference_forward(token_ids, params)
    err = float(jnp.max(jnp.abs(out - ref)))
    assert bool(jnp.all(jnp.isfinite(out))), "non-finite output"
    assert err < 5e-2, f"max abs err vs reference: {err}"
    print("KERNEL_OK")
</pallas_src>

<mosaic_0001>
module attributes {stable_mosaic.version = 11 : i64} {
  func.func @clip_encoder_kernel(%arg0: i32, %arg1: memref<8x128xf32, #tpu.memory_space<vmem>>, %arg2: memref<8x8xf32, #tpu.memory_space<vmem>>, %arg3: memref<2x128xf32, #tpu.memory_space<vmem>>, %arg4: memref<1x6x128xf32, #tpu.memory_space<vmem>>, %arg5: memref<1x128x384xbf16, #tpu.memory_space<vmem>>, %arg6: memref<1x1x384xf32, #tpu.memory_space<vmem>>, %arg7: memref<1x128x128xbf16, #tpu.memory_space<vmem>>, %arg8: memref<1x128x512xbf16, #tpu.memory_space<vmem>>, %arg9: memref<1x1x512xf32, #tpu.memory_space<vmem>>, %arg10: memref<1x512x128xbf16, #tpu.memory_space<vmem>>, %arg11: memref<8x128xf32, #tpu.memory_space<vmem>>, %arg12: memref<8x128xf32, #tpu.memory_space<vmem>>) attributes {dimension_semantics = [#tpu.dimension_semantics<arbitrary>], iteration_bounds = array<i64: 2>, scalar_prefetch = 0 : i64, scratch_operands = 1 : i64, tpu.core_type = #tpu.core_type<tc>, window_params = [{pipeline_mode = #tpu.pipeline_mode<synchronous>, transform_indices = @transform_0, window_bounds = array<i64: 8, 128>}, {pipeline_mode = #tpu.pipeline_mode<synchronous>, transform_indices = @transform_1, window_bounds = array<i64: 8, 8>}, {pipeline_mode = #tpu.pipeline_mode<synchronous>, transform_indices = @transform_2, window_bounds = array<i64: 2, 128>}, {transform_indices = @transform_3, window_bounds = array<i64: 1, 6, 128>}, {transform_indices = @transform_4, window_bounds = array<i64: 1, 128, 384>}, {transform_indices = @transform_5, window_bounds = array<i64: 1, 1, 384>}, {transform_indices = @transform_6, window_bounds = array<i64: 1, 128, 128>}, {transform_indices = @transform_7, window_bounds = array<i64: 1, 128, 512>}, {transform_indices = @transform_8, window_bounds = array<i64: 1, 1, 512>}, {transform_indices = @transform_9, window_bounds = array<i64: 1, 512, 128>}, {pipeline_mode = #tpu.pipeline_mode<synchronous>, transform_indices = @transform_10, window_bounds = array<i64: 8, 128>}]} {
    %c0_i32 = arith.constant 0 : i32
    %0 = arith.cmpi eq, %arg0, %c0_i32 : i32
    %1 = arith.extui %0 : i1 to i32
    %c0_i32_0 = arith.constant 0 : i32
    %2 = arith.cmpi ne, %1, %c0_i32_0 : i32
    scf.if %2 {
      %c0_59 = arith.constant 0 : index
      %c0_60 = arith.constant 0 : index
      %167 = vector.load %arg1[%c0_59, %c0_60] : memref<8x128xf32, #tpu.memory_space<vmem>>, vector<8x128xf32>
      %c0_61 = arith.constant 0 : index
      %c0_62 = arith.constant 0 : index
      %168 = vector.load %arg12[%c0_61, %c0_62] : memref<8x128xf32, #tpu.memory_space<vmem>>, vector<8x128xf32>
      tpu.vector_store %arg12[%c0_61, %c0_62], %167 {strides = array<i32>} : memref<8x128xf32, #tpu.memory_space<vmem>>, vector<8x128xf32>,
    } else {
    }
    %c0 = arith.constant 0 : index
    %c0_1 = arith.constant 0 : index
    %3 = vector.load %arg12[%c0, %c0_1] : memref<8x128xf32, #tpu.memory_space<vmem>>, vector<8x128xf32>
    %c0_2 = arith.constant 0 : index
    %c0_3 = arith.constant 0 : index
    %c0_4 = arith.constant 0 : index
    %4 = vector.load %arg4[%c0_2, %c0_3, %c0_4] : memref<1x6x128xf32, #tpu.memory_space<vmem>>, vector<1x6x128xf32>
    %5 = vector.shape_cast %4 : vector<1x6x128xf32> to vector<6x128xf32>
    %6 = vector.extract_strided_slice %5 {offsets = [0, 0], sizes = [1, 128], strides = [1, 1]} : vector<6x128xf32> to vector<1x128xf32>
    %7 = vector.extract_strided_slice %5 {offsets = [1, 0], sizes = [1, 128], strides = [1, 1]} : vector<6x128xf32> to vector<1x128xf32>
    %8 = vector.extract_strided_slice %5 {offsets = [2, 0], sizes = [1, 128], strides = [1, 1]} : vector<6x128xf32> to vector<1x128xf32>
    %9 = vector.extract_strided_slice %5 {offsets = [3, 0], sizes = [1, 128], strides = [1, 1]} : vector<6x128xf32> to vector<1x128xf32>
    %10 = vector.extract_strided_slice %5 {offsets = [4, 0], sizes = [1, 128], strides = [1, 1]} : vector<6x128xf32> to vector<1x128xf32>
    %11 = vector.extract_strided_slice %5 {offsets = [5, 0], sizes = [1, 128], strides = [1, 1]} : vector<6x128xf32> to vector<1x128xf32>
    %c0_5 = arith.constant 0 : index
    %c0_6 = arith.constant 0 : index
    %12 = vector.load %arg2[%c0_5, %c0_6] : memref<8x8xf32, #tpu.memory_space<vmem>>, vector<8x8xf32>
    %cst = arith.constant dense<0.000000e+00> : vector<8xf32>
    %13 = vector.multi_reduction <add>, %3, %cst [1] : vector<8x128xf32> to vector<8xf32>
    %14 = vector.shape_cast %13 : vector<8xf32> to vector<8x1xf32>
    %cst_7 = arith.constant 1.280000e+02 : f32
    %15 = vector.broadcast %cst_7 : f32 to vector<8x1xf32>
    %16 = arith.divf %14, %15 : vector<8x1xf32>
    %17 = vector.broadcast %16 : vector<8x1xf32> to vector<8x128xf32>
    %18 = arith.subf %3, %17 : vector<8x128xf32>
    %19 = arith.mulf %18, %18 : vector<8x128xf32>
    %cst_8 = arith.constant dense<0.000000e+00> : vector<8xf32>
    %20 = vector.multi_reduction <add>, %19, %cst_8 [1] : vector<8x128xf32> to vector<8xf32>
    %21 = vector.shape_cast %20 : vector<8xf32> to vector<8x1xf32>
    %cst_9 = arith.constant 1.280000e+02 : f32
    %22 = vector.broadcast %cst_9 : f32 to vector<8x1xf32>
    %23 = arith.divf %21, %22 : vector<8x1xf32>
    %24 = vector.broadcast %16 : vector<8x1xf32> to vector<8x128xf32>
    %25 = arith.subf %3, %24 : vector<8x128xf32>
    %cst_10 = arith.constant 9.99999974E-6 : f32
    %26 = vector.broadcast %cst_10 : f32 to vector<8x1xf32>
    %27 = arith.addf %23, %26 : vector<8x1xf32>
    %28 = math.rsqrt %27 : vector<8x1xf32>
    %29 = vector.broadcast %28 : vector<8x1xf32> to vector<8x128xf32>
    %30 = arith.mulf %25, %29 : vector<8x128xf32>
    %31 = vector.broadcast %6 : vector<1x128xf32> to vector<8x128xf32>
    %32 = arith.mulf %30, %31 : vector<8x128xf32>
    %33 = vector.broadcast %7 : vector<1x128xf32> to vector<8x128xf32>
    %34 = arith.addf %32, %33 : vector<8x128xf32>
    %35 = arith.truncf %34 : vector<8x128xf32> to vector<8x128xbf16>
    %c0_11 = arith.constant 0 : index
    %c0_12 = arith.constant 0 : index
    %c0_13 = arith.constant 0 : index
    %36 = vector.load %arg5[%c0_11, %c0_12, %c0_13] : memref<1x128x384xbf16, #tpu.memory_space<vmem>>, vector<1x128x384xbf16>
    %37 = vector.shape_cast %36 : vector<1x128x384xbf16> to vector<128x384xbf16>
    %cst_14 = arith.constant dense<0.000000e+00> : vector<8x384xf32>
    %38 = tpu.matmul %35, %37, %cst_14 {dimension_numbers = #tpu.dot_dimension_numbers<[1], [0], [0], [1], [0, 0, 1, 1], [], []>} : vector<8x128xbf16>, vector<128x384xbf16>, vector<8x384xf32> -> vector<8x384xf32>
    %c0_15 = arith.constant 0 : index
    %c0_16 = arith.constant 0 : index
    %c0_17 = arith.constant 0 : index
    %39 = vector.load %arg6[%c0_15, %c0_16, %c0_17] : memref<1x1x384xf32, #tpu.memory_space<vmem>>, vector<1x1x384xf32>
    %40 = vector.shape_cast %39 : vector<1x1x384xf32> to vector<1x384xf32>
    %41 = vector.broadcast %40 : vector<1x384xf32> to vector<8x384xf32>
    %42 = arith.addf %38, %41 : vector<8x384xf32>
    %43 = vector.extract_strided_slice %42 {offsets = [0, 0], sizes = [8, 128], strides = [1, 1]} : vector<8x384xf32> to vector<8x128xf32>
    %44 = vector.extract_strided_slice %42 {offsets = [0, 128], sizes = [8, 128], strides = [1, 1]} : vector<8x384xf32> to vector<8x128xf32>
    %45 = vector.extract_strided_slice %42 {offsets = [0, 256], sizes = [8, 128], strides = [1, 1]} : vector<8x384xf32> to vector<8x128xf32>
    %46 = vector.extract_strided_slice %43 {offsets = [0, 0], sizes = [8, 32], strides = [1, 1]} : vector<8x128xf32> to vector<8x32xf32>
    %47 = vector.extract_strided_slice %44 {offsets = [0, 0], sizes = [8, 32], strides = [1, 1]} : vector<8x128xf32> to vector<8x32xf32>
    %48 = vector.extract_strided_slice %45 {offsets = [0, 0], sizes = [8, 32], strides = [1, 1]} : vector<8x128xf32> to vector<8x32xf32>
    %cst_18 = arith.constant dense<0.000000e+00> : vector<8x8xf32>
    %49 = tpu.matmul %46, %47, %cst_18 {dimension_numbers = #tpu.dot_dimension_numbers<[1], [1], [0], [0], [0, 0, 1, 0], [], []>} : vector<8x32xf32>, vector<8x32xf32>, vector<8x8xf32> -> vector<8x8xf32>
    %50 = arith.addf %49, %12 : vector<8x8xf32>
    %cst_19 = arith.constant dense<0xFF800000> : vector<8xf32>
    %51 = vector.multi_reduction <maximumf>, %50, %cst_19 [1] : vector<8x8xf32> to vector<8xf32>
    %52 = vector.shape_cast %51 : vector<8xf32> to vector<8x1xf32>
    %53 = vector.broadcast %52 : vector<8x1xf32> to vector<8x8xf32>
    %54 = arith.subf %50, %53 : vector<8x8xf32>
    %55 = math.exp %54 : vector<8x8xf32>
    %cst_20 = arith.constant dense<0.000000e+00> : vector<8xf32>
    %56 = vector.multi_reduction <add>, %55, %cst_20 [1] : vector<8x8xf32> to vector<8xf32>
    %57 = vector.shape_cast %56 : vector<8xf32> to vector<8x1xf32>
    %58 = tpu.reciprocal %57 {approx = true} : vector<8x1xf32> -> vector<8x1xf32>
    %59 = vector.broadcast %58 : vector<8x1xf32> to vector<8x8xf32>
    %60 = arith.mulf %55, %59 : vector<8x8xf32>
    %cst_21 = arith.constant dense<0.000000e+00> : vector<8x32xf32>
    %61 = tpu.matmul %60, %48, %cst_21 {dimension_numbers = #tpu.dot_dimension_numbers<[1], [0], [0], [1], [0, 0, 1, 1], [], []>} : vector<8x8xf32>, vector<8x32xf32>, vector<8x32xf32> -> vector<8x32xf32>
    %62 = vector.extract_strided_slice %43 {offsets = [0, 32], sizes = [8, 32], strides = [1, 1]} : vector<8x128xf32> to vector<8x32xf32>
    %63 = vector.extract_strided_slice %44 {offsets = [0, 32], sizes = [8, 32], strides = [1, 1]} : vector<8x128xf32> to vector<8x32xf32>
    %64 = vector.extract_strided_slice %45 {offsets = [0, 32], sizes = [8, 32], strides = [1, 1]} : vector<8x128xf32> to vector<8x32xf32>
    %cst_22 = arith.constant dense<0.000000e+00> : vector<8x8xf32>
    %65 = tpu.matmul %62, %63, %cst_22 {dimension_numbers = #tpu.dot_dimension_numbers<[1], [1], [0], [0], [0, 0, 1, 0], [], []>} : vector<8x32xf32>, vector<8x32xf32>, vector<8x8xf32> -> vector<8x8xf32>
    %66 = arith.addf %65, %12 : vector<8x8xf32>
    %cst_23 = arith.constant dense<0xFF800000> : vector<8xf32>
    %67 = vector.multi_reduction <maximumf>, %66, %cst_23 [1] : vector<8x8xf32> to vector<8xf32>
    %68 = vector.shape_cast %67 : vector<8xf32> to vector<8x1xf32>
    %69 = vector.broadcast %68 : vector<8x1xf32> to vector<8x8xf32>
    %70 = arith.subf %66, %69 : vector<8x8xf32>
    %71 = math.exp %70 : vector<8x8xf32>
    %cst_24 = arith.constant dense<0.000000e+00> : vector<8xf32>
    %72 = vector.multi_reduction <add>, %71, %cst_24 [1] : vector<8x8xf32> to vector<8xf32>
    %73 = vector.shape_cast %72 : vector<8xf32> to vector<8x1xf32>
    %74 = tpu.reciprocal %73 {approx = true} : vector<8x1xf32> -> vector<8x1xf32>
    %75 = vector.broadcast %74 : vector<8x1xf32> to vector<8x8xf32>
    %76 = arith.mulf %71, %75 : vector<8x8xf32>
    %cst_25 = arith.constant dense<0.000000e+00> : vector<8x32xf32>
    %77 = tpu.matmul %76, %64, %cst_25 {dimension_numbers = #tpu.dot_dimension_numbers<[1], [0], [0], [1], [0, 0, 1, 1], [], []>} : vector<8x8xf32>, vector<8x32xf32>, vector<8x32xf32> -> vector<8x32xf32>
    %78 = vector.extract_strided_slice %43 {offsets = [0, 64], sizes = [8, 32], strides = [1, 1]} : vector<8x128xf32> to vector<8x32xf32>
    %79 = vector.extract_strided_slice %44 {offsets = [0, 64], sizes = [8, 32], strides = [1, 1]} : vector<8x128xf32> to vector<8x32xf32>
    %80 = vector.extract_strided_slice %45 {offsets = [0, 64], sizes = [8, 32], strides = [1, 1]} : vector<8x128xf32> to vector<8x32xf32>
    %cst_26 = arith.constant dense<0.000000e+00> : vector<8x8xf32>
    %81 = tpu.matmul %78, %79, %cst_26 {dimension_numbers = #tpu.dot_dimension_numbers<[1], [1], [0], [0], [0, 0, 1, 0], [], []>} : vector<8x32xf32>, vector<8x32xf32>, vector<8x8xf32> -> vector<8x8xf32>
    %82 = arith.addf %81, %12 : vector<8x8xf32>
    %cst_27 = arith.constant dense<0xFF800000> : vector<8xf32>
    %83 = vector.multi_reduction <maximumf>, %82, %cst_27 [1] : vector<8x8xf32> to vector<8xf32>
    %84 = vector.shape_cast %83 : vector<8xf32> to vector<8x1xf32>
    %85 = vector.broadcast %84 : vector<8x1xf32> to vector<8x8xf32>
    %86 = arith.subf %82, %85 : vector<8x8xf32>
    %87 = math.exp %86 : vector<8x8xf32>
    %cst_28 = arith.constant dense<0.000000e+00> : vector<8xf32>
    %88 = vector.multi_reduction <add>, %87, %cst_28 [1] : vector<8x8xf32> to vector<8xf32>
    %89 = vector.shape_cast %88 : vector<8xf32> to vector<8x1xf32>
    %90 = tpu.reciprocal %89 {approx = true} : vector<8x1xf32> -> vector<8x1xf32>
    %91 = vector.broadcast %90 : vector<8x1xf32> to vector<8x8xf32>
    %92 = arith.mulf %87, %91 : vector<8x8xf32>
    %cst_29 = arith.constant dense<0.000000e+00> : vector<8x32xf32>
    %93 = tpu.matmul %92, %80, %cst_29 {dimension_numbers = #tpu.dot_dimension_numbers<[1], [0], [0], [1], [0, 0, 1, 1], [], []>} : vector<8x8xf32>, vector<8x32xf32>, vector<8x32xf32> -> vector<8x32xf32>
    %94 = vector.extract_strided_slice %43 {offsets = [0, 96], sizes = [8, 32], strides = [1, 1]} : vector<8x128xf32> to vector<8x32xf32>
    %95 = vector.extract_strided_slice %44 {offsets = [0, 96], sizes = [8, 32], strides = [1, 1]} : vector<8x128xf32> to vector<8x32xf32>
    %96 = vector.extract_strided_slice %45 {offsets = [0, 96], sizes = [8, 32], strides = [1, 1]} : vector<8x128xf32> to vector<8x32xf32>
    %cst_30 = arith.constant dense<0.000000e+00> : vector<8x8xf32>
    %97 = tpu.matmul %94, %95, %cst_30 {dimension_numbers = #tpu.dot_dimension_numbers<[1], [1], [0], [0], [0, 0, 1, 0], [], []>} : vector<8x32xf32>, vector<8x32xf32>, vector<8x8xf32> -> vector<8x8xf32>
    %98 = arith.addf %97, %12 : vector<8x8xf32>
    %cst_31 = arith.constant dense<0xFF800000> : vector<8xf32>
    %99 = vector.multi_reduction <maximumf>, %98, %cst_31 [1] : vector<8x8xf32> to vector<8xf32>
    %100 = vector.shape_cast %99 : vector<8xf32> to vector<8x1xf32>
    %101 = vector.broadcast %100 : vector<8x1xf32> to vector<8x8xf32>
    %102 = arith.subf %98, %101 : vector<8x8xf32>
    %103 = math.exp %102 : vector<8x8xf32>
    %cst_32 = arith.constant dense<0.000000e+00> : vector<8xf32>
    %104 = vector.multi_reduction <add>, %103, %cst_32 [1] : vector<8x8xf32> to vector<8xf32>
    %105 = vector.shape_cast %104 : vector<8xf32> to vector<8x1xf32>
    %106 = tpu.reciprocal %105 {approx = true} : vector<8x1xf32> -> vector<8x1xf32>
    %107 = vector.broadcast %106 : vector<8x1xf32> to vector<8x8xf32>
    %108 = arith.mulf %103, %107 : vector<8x8xf32>
    %cst_33 = arith.constant dense<0.000000e+00> : vector<8x32xf32>
    %109 = tpu.matmul %108, %96, %cst_33 {dimension_numbers = #tpu.dot_dimension_numbers<[1], [0], [0], [1], [0, 0, 1, 1], [], []>} : vector<8x8xf32>, vector<8x32xf32>, vector<8x32xf32> -> vector<8x32xf32>
    %110 = tpu.concatenate %61, %77, %93, %109 in 1 : vector<8x32xf32>, vector<8x32xf32>, vector<8x32xf32>, vector<8x32xf32> -> vector<8x128xf32>
    %111 = arith.truncf %110 : vector<8x128xf32> to vector<8x128xbf16>
    %c0_34 = arith.constant 0 : index
    %c0_35 = arith.constant 0 : index
    %c0_36 = arith.constant 0 : index
    %112 = vector.load %arg7[%c0_34, %c0_35, %c0_36] : memref<1x128x128xbf16, #tpu.memory_space<vmem>>, vector<1x128x128xbf16>
    %113 = vector.shape_cast %112 : vector<1x128x128xbf16> to vector<128x128xbf16>
    %cst_37 = arith.constant dense<0.000000e+00> : vector<8x128xf32>
    %114 = tpu.matmul %111, %113, %cst_37 {dimension_numbers = #tpu.dot_dimension_numbers<[1], [0], [0], [1], [0, 0, 1, 1], [], []>} : vector<8x128xbf16>, vector<128x128xbf16>, vector<8x128xf32> -> vector<8x128xf32>
    %115 = vector.broadcast %10 : vector<1x128xf32> to vector<8x128xf32>
    %116 = arith.addf %114, %115 : vector<8x128xf32>
    %117 = arith.addf %3, %116 : vector<8x128xf32>
    %cst_38 = arith.constant dense<0.000000e+00> : vector<8xf32>
    %118 = vector.multi_reduction <add>, %117, %cst_38 [1] : vector<8x128xf32> to vector<8xf32>
    %119 = vector.shape_cast %118 : vector<8xf32> to vector<8x1xf32>
    %cst_39 = arith.constant 1.280000e+02 : f32
    %120 = vector.broadcast %cst_39 : f32 to vector<8x1xf32>
    %121 = arith.divf %119, %120 : vector<8x1xf32>
    %122 = vector.broadcast %121 : vector<8x1xf32> to vector<8x128xf32>
    %123 = arith.subf %117, %122 : vector<8x128xf32>
    %124 = arith.mulf %123, %123 : vector<8x128xf32>
    %cst_40 = arith.constant dense<0.000000e+00> : vector<8xf32>
    %125 = vector.multi_reduction <add>, %124, %cst_40 [1] : vector<8x128xf32> to vector<8xf32>
    %126 = vector.shape_cast %125 : vector<8xf32> to vector<8x1xf32>
    %cst_41 = arith.constant 1.280000e+02 : f32
    %127 = vector.broadcast %cst_41 : f32 to vector<8x1xf32>
    %128 = arith.divf %126, %127 : vector<8x1xf32>
    %129 = vector.broadcast %121 : vector<8x1xf32> to vector<8x128xf32>
    %130 = arith.subf %117, %129 : vector<8x128xf32>
    %cst_42 = arith.constant 9.99999974E-6 : f32
    %131 = vector.broadcast %cst_42 : f32 to vector<8x1xf32>
    %132 = arith.addf %128, %131 : vector<8x1xf32>
    %133 = math.rsqrt %132 : vector<8x1xf32>
    %134 = vector.broadcast %133 : vector<8x1xf32> to vector<8x128xf32>
    %135 = arith.mulf %130, %134 : vector<8x128xf32>
    %136 = vector.broadcast %8 : vector<1x128xf32> to vector<8x128xf32>
    %137 = arith.mulf %135, %136 : vector<8x128xf32>
    %138 = vector.broadcast %9 : vector<1x128xf32> to vector<8x128xf32>
    %139 = arith.addf %137, %138 : vector<8x128xf32>
    %140 = arith.truncf %139 : vector<8x128xf32> to vector<8x128xbf16>
    %c0_43 = arith.constant 0 : index
    %c0_44 = arith.constant 0 : index
    %c0_45 = arith.constant 0 : index
    %141 = vector.load %arg8[%c0_43, %c0_44, %c0_45] : memref<1x128x512xbf16, #tpu.memory_space<vmem>>, vector<1x128x512xbf16>
    %142 = vector.shape_cast %141 : vector<1x128x512xbf16> to vector<128x512xbf16>
    %cst_46 = arith.constant dense<0.000000e+00> : vector<8x512xf32>
    %143 = tpu.matmul %140, %142, %cst_46 {dimension_numbers = #tpu.dot_dimension_numbers<[1], [0], [0], [1], [0, 0, 1, 1], [], []>} : vector<8x128xbf16>, vector<128x512xbf16>, vector<8x512xf32> -> vector<8x512xf32>
    %c0_47 = arith.constant 0 : index
    %c0_48 = arith.constant 0 : index
    %c0_49 = arith.constant 0 : index
    %144 = vector.load %arg9[%c0_47, %c0_48, %c0_49] : memref<1x1x512xf32, #tpu.memory_space<vmem>>, vector<1x1x512xf32>
    %145 = vector.shape_cast %144 : vector<1x1x512xf32> to vector<1x512xf32>
    %146 = vector.broadcast %145 : vector<1x512xf32> to vector<8x512xf32>
    %147 = arith.addf %143, %146 : vector<8x512xf32>
    %cst_50 = arith.constant 1.702000e+00 : f32
    %148 = vector.broadcast %cst_50 : f32 to vector<8x512xf32>
    %149 = arith.mulf %148, %147 : vector<8x512xf32>
    %150 = arith.negf %149 : vector<8x512xf32>
    %151 = math.exp %150 : vector<8x512xf32>
    %cst_51 = arith.constant 1.000000e+00 : f32
    %152 = vector.broadcast %cst_51 : f32 to vector<8x512xf32>
    %153 = arith.addf %152, %151 : vector<8x512xf32>
    %154 = arith.divf %152, %153 : vector<8x512xf32>
    %155 = arith.mulf %147, %154 : vector<8x512xf32>
    %156 = arith.truncf %155 : vector<8x512xf32> to vector<8x512xbf16>
    %c0_52 = arith.constant 0 : index
    %c0_53 = arith.constant 0 : index
    %c0_54 = arith.constant 0 : index
    %157 = vector.load %arg10[%c0_52, %c0_53, %c0_54] : memref<1x512x128xbf16, #tpu.memory_space<vmem>>, vector<1x512x128xbf16>
    %158 = vector.shape_cast %157 : vector<1x512x128xbf16> to vector<512x128xbf16>
    %cst_55 = arith.constant dense<0.000000e+00> : vector<8x128xf32>
    %159 = tpu.matmul %156, %158, %cst_55 {dimension_numbers = #tpu.dot_dimension_numbers<[1], [0], [0], [1], [0, 0, 1, 1], [], []>} : vector<8x512xbf16>, vector<512x128xbf16>, vector<8x128xf32> -> vector<8x128xf32>
    %160 = vector.broadcast %11 : vector<1x128xf32> to vector<8x128xf32>
    %161 = arith.addf %159, %160 : vector<8x128xf32>
    %162 = arith.addf %117, %161 : vector<8x128xf32>
    %c0_56 = arith.constant 0 : index
    %c0_57 = arith.constant 0 : index
    %163 = vector.load %arg12[%c0_56, %c0_57] : memref<8x128xf32, #tpu.memory_space<vmem>>, vector<8x128xf32>
    tpu.vector_store %arg12[%c0_56, %c0_57], %162 {strides = array<i32>} : memref<8x128xf32, #tpu.memory_space<vmem>>, vector<8x128xf32>,
    %c1_i32 = arith.constant 1 : i32
    %164 = arith.cmpi eq, %arg0, %c1_i32 : i32
    %165 = arith.extui %164 : i1 to i32
    %c0_i32_58 = arith.constant 0 : i32
    %166 = arith.cmpi ne, %165, %c0_i32_58 : i32
    scf.if %166 {
      %c0_59 = arith.constant 0 : index
      %c0_60 = arith.constant 0 : index
      %167 = vector.load %arg3[%c0_59, %c0_60] : memref<2x128xf32, #tpu.memory_space<vmem>>, vector<2x128xf32>
      %168 = vector.extract_strided_slice %167 {offsets = [0, 0], sizes = [1, 128], strides = [1, 1]} : vector<2x128xf32> to vector<1x128xf32>
      %169 = vector.extract_strided_slice %167 {offsets = [1, 0], sizes = [1, 128], strides = [1, 1]} : vector<2x128xf32> to vector<1x128xf32>
      %cst_61 = arith.constant dense<0.000000e+00> : vector<8xf32>
      %170 = vector.multi_reduction <add>, %162, %cst_61 [1] : vector<8x128xf32> to vector<8xf32>
      %171 = vector.shape_cast %170 : vector<8xf32> to vector<8x1xf32>
      %cst_62 = arith.constant 1.280000e+02 : f32
      %172 = vector.broadcast %cst_62 : f32 to vector<8x1xf32>
      %173 = arith.divf %171, %172 : vector<8x1xf32>
      %174 = vector.broadcast %173 : vector<8x1xf32> to vector<8x128xf32>
      %175 = arith.subf %162, %174 : vector<8x128xf32>
      %176 = arith.mulf %175, %175 : vector<8x128xf32>
      %cst_63 = arith.constant dense<0.000000e+00> : vector<8xf32>
      %177 = vector.multi_reduction <add>, %176, %cst_63 [1] : vector<8x128xf32> to vector<8xf32>
      %178 = vector.shape_cast %177 : vector<8xf32> to vector<8x1xf32>
      %cst_64 = arith.constant 1.280000e+02 : f32
      %179 = vector.broadcast %cst_64 : f32 to vector<8x1xf32>
      %180 = arith.divf %178, %179 : vector<8x1xf32>
      %181 = vector.broadcast %173 : vector<8x1xf32> to vector<8x128xf32>
      %182 = arith.subf %162, %181 : vector<8x128xf32>
      %cst_65 = arith.constant 9.99999974E-6 : f32
      %183 = vector.broadcast %cst_65 : f32 to vector<8x1xf32>
      %184 = arith.addf %180, %183 : vector<8x1xf32>
      %185 = math.rsqrt %184 : vector<8x1xf32>
      %186 = vector.broadcast %185 : vector<8x1xf32> to vector<8x128xf32>
      %187 = arith.mulf %182, %186 : vector<8x128xf32>
      %188 = vector.broadcast %168 : vector<1x128xf32> to vector<8x128xf32>
      %189 = arith.mulf %187, %188 : vector<8x128xf32>
      %190 = vector.broadcast %169 : vector<1x128xf32> to vector<8x128xf32>
      %191 = arith.addf %189, %190 : vector<8x128xf32>
      %c0_66 = arith.constant 0 : index
      %c0_67 = arith.constant 0 : index
      %192 = vector.load %arg11[%c0_66, %c0_67] : memref<8x128xf32, #tpu.memory_space<vmem>>, vector<8x128xf32>
      tpu.vector_store %arg11[%c0_66, %c0_67], %191 {strides = array<i32>} : memref<8x128xf32, #tpu.memory_space<vmem>>, vector<8x128xf32>,
    } else {
    }
    return
  }
  func.func @transform_0(%arg0: i32) -> (i32, i32) {
    %c0_i32 = arith.constant 0 : i32
    %c0_i32_0 = arith.constant 0 : i32
    %c0_i32_1 = arith.constant 0 : i32
    return %c0_i32, %c0_i32_0 : i32, i32
  }
  func.func @transform_1(%arg0: i32) -> (i32, i32) {
    %c0_i32 = arith.constant 0 : i32
    %c0_i32_0 = arith.constant 0 : i32
    %c0_i32_1 = arith.constant 0 : i32
    return %c0_i32, %c0_i32_0 : i32, i32
  }
  func.func @transform_2(%arg0: i32) -> (i32, i32) {
    %c0_i32 = arith.constant 0 : i32
    %c0_i32_0 = arith.constant 0 : i32
    %c0_i32_1 = arith.constant 0 : i32
    return %c0_i32, %c0_i32_0 : i32, i32
  }
  func.func @transform_3(%arg0: i32) -> (i32, i32, i32) {
    %c0_i32 = arith.constant 0 : i32
    %c0_i32_0 = arith.constant 0 : i32
    %c0_i32_1 = arith.constant 0 : i32
    return %arg0, %c0_i32, %c0_i32_0 : i32, i32, i32
  }
  func.func @transform_4(%arg0: i32) -> (i32, i32, i32) {
    %c0_i32 = arith.constant 0 : i32
    %c0_i32_0 = arith.constant 0 : i32
    %c0_i32_1 = arith.constant 0 : i32
    return %arg0, %c0_i32, %c0_i32_0 : i32, i32, i32
  }
  func.func @transform_5(%arg0: i32) -> (i32, i32, i32) {
    %c0_i32 = arith.constant 0 : i32
    %c0_i32_0 = arith.constant 0 : i32
    %c0_i32_1 = arith.constant 0 : i32
    return %arg0, %c0_i32, %c0_i32_0 : i32, i32, i32
  }
  func.func @transform_6(%arg0: i32) -> (i32, i32, i32) {
    %c0_i32 = arith.constant 0 : i32
    %c0_i32_0 = arith.constant 0 : i32
    %c0_i32_1 = arith.constant 0 : i32
    return %arg0, %c0_i32, %c0_i32_0 : i32, i32, i32
  }
  func.func @transform_7(%arg0: i32) -> (i32, i32, i32) {
    %c0_i32 = arith.constant 0 : i32
    %c0_i32_0 = arith.constant 0 : i32
    %c0_i32_1 = arith.constant 0 : i32
    return %arg0, %c0_i32, %c0_i32_0 : i32, i32, i32
  }
  func.func @transform_8(%arg0: i32) -> (i32, i32, i32) {
    %c0_i32 = arith.constant 0 : i32
    %c0_i32_0 = arith.constant 0 : i32
    %c0_i32_1 = arith.constant 0 : i32
    return %arg0, %c0_i32, %c0_i32_0 : i32, i32, i32
  }
  func.func @transform_9(%arg0: i32) -> (i32, i32, i32) {
    %c0_i32 = arith.constant 0 : i32
    %c0_i32_0 = arith.constant 0 : i32
    %c0_i32_1 = arith.constant 0 : i32
    return %arg0, %c0_i32, %c0_i32_0 : i32, i32, i32
  }
  func.func @transform_10(%arg0: i32) -> (i32, i32) {
    %c0_i32 = arith.constant 0 : i32
    %c0_i32_0 = arith.constant 0 : i32
    %c0_i32_1 = arith.constant 0 : i32
    return %c0_i32, %c0_i32_0 : i32, i32
  }
}

</mosaic_0001>

<llo_original>
// kernel: tpu_custom_call.1
$region0: #{tpu_custom_call.1}
  #allocation0 [shape = 'u32[]', space=smem, size = 0x4, offset = 0x4, fixed_abs, tag = 'smem constant byte address 0x4 - core index']
  #allocation1 [shape = 'u32[144,128]{1,0:T(1,128)}', space=vmem, size = 0x12000, scoped, tag = 'internal scratch']
  #allocation2 [shape = 'f32[8,128]{1,0:T(8,128)}', space=vmem, size = 0x1000, scoped, tag = 'scratch operand']
  %s0 = inlined_call_operand.vmem [shape: f32[8,128], index: 0, kind: input, shape index: {}]
  %s1 = inlined_call_operand.vmem [shape: f32[8,8], index: 1, kind: input, shape index: {}]
  %s2 = inlined_call_operand.vmem [shape: f32[2,128], index: 2, kind: input, shape index: {}]
  %s3 = inlined_call_operand.vmem [shape: f32[2,6,128], index: 3, kind: input, shape index: {}]
  %s4 = inlined_call_operand.hbm [shape: bf16[2,128,384], index: 4, kind: input, shape index: {}]
  %s5 = inlined_call_operand.vmem [shape: f32[2,1,384], index: 5, kind: input, shape index: {}]
  %s6 = inlined_call_operand.hbm [shape: bf16[2,128,128], index: 6, kind: input, shape index: {}]
  %s7 = inlined_call_operand.hbm [shape: bf16[2,128,512], index: 7, kind: input, shape index: {}]
  %s8 = inlined_call_operand.vmem [shape: f32[2,1,512], index: 8, kind: input, shape index: {}]
  %s9 = inlined_call_operand.hbm [shape: bf16[2,512,128], index: 9, kind: input, shape index: {}]
  %s10 = inlined_call_operand.hbm [shape: f32[8,128], index: 10, kind: output, shape index: {}]
  %s11 = sld [smem:[#allocation0]]
  $region97: #{tpu_custom_call.1} parent=0
    _
  %s13 = ssub.s32 1, %s11
  %s14 = scalar_select 0, %s13, %s11
  $region1: #{tpu_custom_call.1} parent=0
    #allocation3 [shape = 'u8[196608]{0}', space=vmem, size = 0x30000, scoped, tag = 'input window, operand 4']
    #allocation4 [shape = 's32[2]{0}', space=sflag, size = 0x8, scoped, tag = 'scoped memory for tpu_custom_call.1']
    #allocation5 [shape = 's32[2]{0}', space=sflag, size = 0x8, scoped, tag = 'scoped memory for tpu_custom_call.1']
    #allocation6 [shape = 'u8[65536]{0}', space=vmem, size = 0x10000, scoped, tag = 'input window, operand 6']
    #allocation7 [shape = 's32[2]{0}', space=sflag, size = 0x8, scoped, tag = 'scoped memory for tpu_custom_call.1']
    #allocation8 [shape = 'u8[262144]{0}', space=vmem, size = 0x40000, scoped, tag = 'input window, operand 7']
    #allocation9 [shape = 'u8[262144]{0}', space=vmem, size = 0x40000, scoped, tag = 'input window, operand 9']
    #allocation10 [shape = 's32[2]{0}', space=sflag, size = 0x8, scoped, tag = 'scoped memory for tpu_custom_call.1']
    #allocation11 [shape = 'u8[4096]{0}', space=vmem, size = 0x1000, scoped, tag = 'output window, operand 0, single buffered']
    %15 = vsyncpa [#allocation4], 0
    %s16 = scalar_lea.sflag [#allocation4], 1
    %17 = vsyncpa %s16, 0
    %18 = vsyncpa [#allocation7], 0
    %s19 = scalar_lea.sflag [#allocation7], 1
    %20 = vsyncpa %s19, 0
    %21 = vsyncpa [#allocation10], 0
    %s22 = scalar_lea.sflag [#allocation10], 1
    %23 = vsyncpa %s22, 0
    %24 = vsyncpa [#allocation5], 0
    loop: start=0, step=1, limit=4
    $region2: #{tpu_custom_call.1} parent=1 // loop_pre_header
      _
    $region3: #{tpu_custom_call.1} parent=1 // loop_header
      %s26 = sphi 0, %s30
      %p27 = scmp.ge.s32.totalorder %s26, 4
      %s34 = sphi 0, %s34
      %s36 = sphi 0, %s34
      %s37 = sphi 0, %s36
      %s51 = sphi 0, %s37
      %s55 = sphi 0, %s55
      %s57 = sphi 0, %s55
      %s58 = sphi 0, %s57
      %s72 = sphi 0, %s58
      %s76 = sphi 0, %s76
      %s78 = sphi 0, %s76
      %s79 = sphi 0, %s78
      %s93 = sphi 0, %s79
      %s99 = sphi 0, %s101
      %s102 = sphi 0, %s99
      %s103 = sphi 0, %s102
      %s119 = sphi 0, %s103
      %s125 = sphi 0, %s127
      %s128 = sphi 0, %s125
      %s129 = sphi 0, %s128
      %s145 = sphi 0, %s129
      %s151 = sphi 0, %s153
      %s154 = sphi 0, %s151
      %s155 = sphi 0, %s154
      %s171 = sphi 0, %s155
      %s177 = sphi 0, %s179
      %s180 = sphi 0, %s177
      %s181 = sphi 0, %s180
      %s197 = sphi 0, %s181
      %s203 = sphi 0, %s205
      %s206 = sphi 0, %s203
      %s207 = sphi 0, %s206
      %s223 = sphi 0, %s207
      %s229 = sphi 0, %s231
      %s232 = sphi 0, %s229
      %s233 = sphi 0, %s232
      %s249 = sphi 0, %s233
      %s255 = sphi 0, %s257
      %s258 = sphi 0, %s255
      %s259 = sphi 0, %s258
      %s275 = sphi 0, %s259
      %s279 = sphi 0, %s279
      %s281 = sphi 0, %s279
      %s282 = sphi 0, %s281
      %s296 = sphi 0, %s282
    $region4: #{tpu_custom_call.1} parent=1 // loop_header_branch
      %29 = sbr.rel (%p27) target = $region8
    $region5: #{tpu_custom_call.1} parent=1 // loop_body
      %s31 = ssub.s32 %s26, 1
      %s32 = ssub.s32 %s26, 2
      %s33 = sadd.s32 %s26, 1
      %s35 = sadd.s32 %s34, 1
      %p38 = scmp.eq.s32.totalorder %s26, 1
      %p39 = scmp.ne.s32.totalorder %s34, %s36
      %p40 = scmp.eq.s32.totalorder %s26, 0
      %p41 = por %p39, %p40
      %p42 = scmp.ne.s32.totalorder %s34, %s36
      %p43 = scmp.eq.s32.totalorder %s31, 1
      %p44 = por %p42, %p43
      %p45 = scmp.ne.s32.totalorder %s36, %s37
      %p46 = scmp.eq.s32.totalorder %s31, 0
      %p47 = por %p45, %p46
      %p48 = scmp.ne.s32.totalorder %s36, %s37
      %p49 = scmp.eq.s32.totalorder %s32, 1
      %p50 = por %p48, %p49
      %p52 = scmp.ne.s32.totalorder %s37, %s51
      %p53 = scmp.eq.s32.totalorder %s32, 0
      %p54 = por %p52, %p53
      %s56 = sadd.s32 %s55, 1
      %p59 = scmp.eq.s32.totalorder %s26, 1
      %p60 = scmp.ne.s32.totalorder %s55, %s57
      %p61 = scmp.eq.s32.totalorder %s26, 0
      %p62 = por %p60, %p61
      %p63 = scmp.ne.s32.totalorder %s55, %s57
      %p64 = scmp.eq.s32.totalorder %s31, 1
      %p65 = por %p63, %p64
      %p66 = scmp.ne.s32.totalorder %s57, %s58
      %p67 = scmp.eq.s32.totalorder %s31, 0
      %p68 = por %p66, %p67
      %p69 = scmp.ne.s32.totalorder %s57, %s58
      %p70 = scmp.eq.s32.totalorder %s32, 1
      %p71 = por %p69, %p70
      %p73 = scmp.ne.s32.totalorder %s58, %s72
      %p74 = scmp.eq.s32.totalorder %s32, 0
      %p75 = por %p73, %p74
      %s77 = sadd.s32 %s76, 1
      %p80 = scmp.eq.s32.totalorder %s26, 1
      %p81 = scmp.ne.s32.totalorder %s76, %s78
      %p82 = scmp.eq.s32.totalorder %s26, 0
      %p83 = por %p81, %p82
      %p84 = scmp.ne.s32.totalorder %s76, %s78
      %p85 = scmp.eq.s32.totalorder %s31, 1
      %p86 = por %p84, %p85
      %p87 = scmp.ne.s32.totalorder %s78, %s79
      %p88 = scmp.eq.s32.totalorder %s31, 0
      %p89 = por %p87, %p88
      %p90 = scmp.ne.s32.totalorder %s78, %s79
      %p91 = scmp.eq.s32.totalorder %s32, 1
      %p92 = por %p90, %p91
      %p94 = scmp.ne.s32.totalorder %s79, %s93
      %p95 = scmp.eq.s32.totalorder %s32, 0
      %p96 = por %p94, %p95
      %s97 = ssub.s32 %s26, %s33
      %p98 = scmp.eq.s32.totalorder %s97, 0
      %s100 = sadd.s32 %s99, 1
      %s101 = scalar_select %p98, %s99, %s100
      %p104 = pneg %p98
      %p105 = scmp.eq.s32.totalorder %s26, 1
      %p106 = por %p104, %p105
      %p107 = scmp.ne.s32.totalorder %s99, %s102
      %p108 = scmp.eq.s32.totalorder %s26, 0
      %p109 = por %p107, %p108
      %p110 = scmp.ne.s32.totalorder %s99, %s102
      %p111 = scmp.eq.s32.totalorder %s31, 1
      %p112 = por %p110, %p111
      %p113 = scmp.ne.s32.totalorder %s102, %s103
      %p114 = scmp.eq.s32.totalorder %s31, 0
      %p115 = por %p113, %p114
      %p116 = scmp.ne.s32.totalorder %s102, %s103
      %p117 = scmp.eq.s32.totalorder %s32, 1
      %p118 = por %p116, %p117
      %p120 = scmp.ne.s32.totalorder %s103, %s119
      %p121 = scmp.eq.s32.totalorder %s32, 0
      %p122 = por %p120, %p121
      %s123 = ssub.s32 %s26, %s33
      %p124 = scmp.eq.s32.totalorder %s123, 0
      %s126 = sadd.s32 %s125, 1
      %s127 = scalar_select %p124, %s125, %s126
      %p130 = pneg %p124
      %p131 = scmp.eq.s32.totalorder %s26, 1
      %p132 = por %p130, %p131
      %p133 = scmp.ne.s32.totalorder %s125, %s128
      %p134 = scmp.eq.s32.totalorder %s26, 0
      %p135 = por %p133, %p134
      %p136 = scmp.ne.s32.totalorder %s125, %s128
      %p137 = scmp.eq.s32.totalorder %s31, 1
      %p138 = por %p136, %p137
      %p139 = scmp.ne.s32.totalorder %s128, %s129
      %p140 = scmp.eq.s32.totalorder %s31, 0
      %p141 = por %p139, %p140
      %p142 = scmp.ne.s32.totalorder %s128, %s129
      %p143 = scmp.eq.s32.totalorder %s32, 1
      %p144 = por %p142, %p143
      %p146 = scmp.ne.s32.totalorder %s129, %s145
      %p147 = scmp.eq.s32.totalorder %s32, 0
      %p148 = por %p146, %p147
      %s149 = ssub.s32 %s26, %s33
      %p150 = scmp.eq.s32.totalorder %s149, 0
      %s152 = sadd.s32 %s151, 1
      %s153 = scalar_select %p150, %s151, %s152
      %p156 = pneg %p150
      %p157 = scmp.eq.s32.totalorder %s26, 1
      %p158 = por %p156, %p157
      %p159 = scmp.ne.s32.totalorder %s151, %s154
      %p160 = scmp.eq.s32.totalorder %s26, 0
      %p161 = por %p159, %p160
      %p162 = scmp.ne.s32.totalorder %s151, %s154
      %p163 = scmp.eq.s32.totalorder %s31, 1
      %p164 = por %p162, %p163
      %p165 = scmp.ne.s32.totalorder %s154, %s155
      %p166 = scmp.eq.s32.totalorder %s31, 0
      %p167 = por %p165, %p166
      %p168 = scmp.ne.s32.totalorder %s154, %s155
      %p169 = scmp.eq.s32.totalorder %s32, 1
      %p170 = por %p168, %p169
      %p172 = scmp.ne.s32.totalorder %s155, %s171
      %p173 = scmp.eq.s32.totalorder %s32, 0
      %p174 = por %p172, %p173
      %s175 = ssub.s32 %s26, %s33
      %p176 = scmp.eq.s32.totalorder %s175, 0
      %s178 = sadd.s32 %s177, 1
      %s179 = scalar_select %p176, %s177, %s178
      %p182 = pneg %p176
      %p183 = scmp.eq.s32.totalorder %s26, 1
      %p184 = por %p182, %p183
      %p185 = scmp.ne.s32.totalorder %s177, %s180
      %p186 = scmp.eq.s32.totalorder %s26, 0
      %p187 = por %p185, %p186
      %p188 = scmp.ne.s32.totalorder %s177, %s180
      %p189 = scmp.eq.s32.totalorder %s31, 1
      %p190 = por %p188, %p189
      %p191 = scmp.ne.s32.totalorder %s180, %s181
      %p192 = scmp.eq.s32.totalorder %s31, 0
      %p193 = por %p191, %p192
      %p194 = scmp.ne.s32.totalorder %s180, %s181
      %p195 = scmp.eq.s32.totalorder %s32, 1
      %p196 = por %p194, %p195
      %p198 = scmp.ne.s32.totalorder %s181, %s197
      %p199 = scmp.eq.s32.totalorder %s32, 0
      %p200 = por %p198, %p199
      %s201 = ssub.s32 %s26, %s33
      %p202 = scmp.eq.s32.totalorder %s201, 0
      %s204 = sadd.s32 %s203, 1
      %s205 = scalar_select %p202, %s203, %s204
      %p208 = pneg %p202
      %p209 = scmp.eq.s32.totalorder %s26, 1
      %p210 = por %p208, %p209
      %p211 = scmp.ne.s32.totalorder %s203, %s206
      %p212 = scmp.eq.s32.totalorder %s26, 0
      %p213 = por %p211, %p212
      %p214 = scmp.ne.s32.totalorder %s203, %s206
      %p215 = scmp.eq.s32.totalorder %s31, 1
      %p216 = por %p214, %p215
      %p217 = scmp.ne.s32.totalorder %s206, %s207
      %p218 = scmp.eq.s32.totalorder %s31, 0
      %p219 = por %p217, %p218
      %p220 = scmp.ne.s32.totalorder %s206, %s207
      %p221 = scmp.eq.s32.totalorder %s32, 1
      %p222 = por %p220, %p221
      %p224 = scmp.ne.s32.totalorder %s207, %s223
      %p225 = scmp.eq.s32.totalorder %s32, 0
      %p226 = por %p224, %p225
      %s227 = ssub.s32 %s26, %s33
      %p228 = scmp.eq.s32.totalorder %s227, 0
      %s230 = sadd.s32 %s229, 1
      %s231 = scalar_select %p228, %s229, %s230
      %p234 = pneg %p228
      %p235 = scmp.eq.s32.totalorder %s26, 1
      %p236 = por %p234, %p235
      %p237 = scmp.ne.s32.totalorder %s229, %s232
      %p238 = scmp.eq.s32.totalorder %s26, 0
      %p239 = por %p237, %p238
      %p240 = scmp.ne.s32.totalorder %s229, %s232
      %p241 = scmp.eq.s32.totalorder %s31, 1
      %p242 = por %p240, %p241
      %p243 = scmp.ne.s32.totalorder %s232, %s233
      %p244 = scmp.eq.s32.totalorder %s31, 0
      %p245 = por %p243, %p244
      %p246 = scmp.ne.s32.totalorder %s232, %s233
      %p247 = scmp.eq.s32.totalorder %s32, 1
      %p248 = por %p246, %p247
      %p250 = scmp.ne.s32.totalorder %s233, %s249
      %p251 = scmp.eq.s32.totalorder %s32, 0
      %p252 = por %p250, %p251
      %s253 = ssub.s32 %s26, %s33
      %p254 = scmp.eq.s32.totalorder %s253, 0
      %s256 = sadd.s32 %s255, 1
      %s257 = scalar_select %p254, %s255, %s256
      %p260 = pneg %p254
      %p261 = scmp.eq.s32.totalorder %s26, 1
      %p262 = por %p260, %p261
      %p263 = scmp.ne.s32.totalorder %s255, %s258
      %p264 = scmp.eq.s32.totalorder %s26, 0
      %p265 = por %p263, %p264
      %p266 = scmp.ne.s32.totalorder %s255, %s258
      %p267 = scmp.eq.s32.totalorder %s31, 1
      %p268 = por %p266, %p267
      %p269 = scmp.ne.s32.totalorder %s258, %s259
      %p270 = scmp.eq.s32.totalorder %s31, 0
      %p271 = por %p269, %p270
      %p272 = scmp.ne.s32.totalorder %s258, %s259
      %p273 = scmp.eq.s32.totalorder %s32, 1
      %p274 = por %p272, %p273
      %p276 = scmp.ne.s32.totalorder %s259, %s275
      %p277 = scmp.eq.s32.totalorder %s32, 0
      %p278 = por %p276, %p277
      %s280 = sadd.s32 %s279, 1
      %p283 = scmp.eq.s32.totalorder %s26, 1
      %p284 = scmp.ne.s32.totalorder %s279, %s281
      %p285 = scmp.eq.s32.totalorder %s26, 0
      %p286 = por %p284, %p285
      %p287 = scmp.ne.s32.totalorder %s279, %s281
      %p288 = scmp.eq.s32.totalorder %s31, 1
      %p289 = por %p287, %p288
      %p290 = scmp.ne.s32.totalorder %s281, %s282
      %p291 = scmp.eq.s32.totalorder %s31, 0
      %p292 = por %p290, %p291
      %p293 = scmp.ne.s32.totalorder %s281, %s282
      %p294 = scmp.eq.s32.totalorder %s32, 1
      %p295 = por %p293, %p294
      %p297 = scmp.ne.s32.totalorder %s282, %s296
      %p298 = scmp.eq.s32.totalorder %s32, 0
      %p299 = por %p297, %p298
      %p300 = scmp.le.s32.totalorder 1, %s26
      %p301 = scmp.lt.s32.totalorder %s26, 3
      %p302 = pnand %p300, %p301
      %p303 = pneg %p302
      // Predicated region
      $region9: #{tpu_custom_call.1} parent=5 // pred_check
        _
      $region10: #{tpu_custom_call.1} parent=5 // pred_check_branch
        %305 = sbr.rel (%p302) target = $region12
      $region11: #{tpu_custom_call.1} parent=5 // pred_region
        %s306 = ssub.s32 %s26, 1
        // Predicated region
        $region13: #{tpu_custom_call.1} parent=11 // pred_check
          %p307 = pneg %p47
        $region14: #{tpu_custom_call.1} parent=11 // pred_check_branch
          %309 = sbr.rel (%p307) target = $region16
        $region15: #{tpu_custom_call.1} parent=11 // pred_region
          _
        $region16: #{tpu_custom_call.1} parent=11 // pred_fallthru
          _
        // Predicated region
        $region17: #{tpu_custom_call.1} parent=11 // pred_check
          %p310 = pneg %p68
        $region18: #{tpu_custom_call.1} parent=11 // pred_check_branch
          %312 = sbr.rel (%p310) target = $region20
        $region19: #{tpu_custom_call.1} parent=11 // pred_region
          _
        $region20: #{tpu_custom_call.1} parent=11 // pred_fallthru
          _
        // Predicated region
        $region21: #{tpu_custom_call.1} parent=11 // pred_check
          %p313 = pneg %p89
        $region22: #{tpu_custom_call.1} parent=11 // pred_check_branch
          %315 = sbr.rel (%p313) target = $region24
        $region23: #{tpu_custom_call.1} parent=11 // pred_region
          _
        $region24: #{tpu_custom_call.1} parent=11 // pred_fallthru
          _
      $region12: #{tpu_custom_call.1} parent=5 // pred_fallthru
        _
      %p316 = scmp.lt.s32.totalorder %s26, 2
      // Predicated region
      $region25: #{tpu_custom_call.1} parent=5 // pred_check
        %p317 = pneg %p316
      $region26: #{tpu_custom_call.1} parent=5 // pred_check_branch
        %319 = sbr.rel (%p317) target = $region28
      $region27: #{tpu_custom_call.1} parent=5 // pred_region
        // Predicated region
        $region29: #{tpu_custom_call.1} parent=27 // pred_check
          %p320 = pneg %p109
        $region30: #{tpu_custom_call.1} parent=27 // pred_check_branch
          %322 = sbr.rel (%p320) target = $region32
        $region31: #{tpu_custom_call.1} parent=27 // pred_region
          %p323 = scmp.lt.s32.totalorder %s26, 1
          %s324 = scalar_select %p323, %s26, 1
          %s325 = smul.addr %s324, 8
          %s326 = scalar_lea.vmem %s3, %s325
        $region32: #{tpu_custom_call.1} parent=27 // pred_fallthru
          _
        // Predicated region
        $region33: #{tpu_custom_call.1} parent=27 // pred_check
          %p327 = pneg %p135
        $region34: #{tpu_custom_call.1} parent=27 // pred_check_branch
          %329 = sbr.rel (%p327) target = $region36
        $region35: #{tpu_custom_call.1} parent=27 // pred_region
          %s330 = sand.u32 %s125, 1
          %s331 = scalar_lea.sflag [#allocation4], %s330
          %s332 = sand.u32 %s125, 1
          %s333 = smul.addr %s332, 192
          %s334 = scalar_lea.vmem [#allocation3], %s333
          %s336 = ssub.s32 3072, 3072
          %337 = vsyncadd %s331, %s336
          %s338 = smul.addr %s26, 48
          %s339 = smul.addr %s338, 64
          %s340 = scalar_lea.hbm %s4, %s339
          %s341 = sshll.u32 %s334, 4
          %s342 = int_to_ptr.vmem [resolvable:$true] %s341
          %347 = dma.hbm_to_vmem [thread:$0]  %s340, 3072, %s342, %s331, 192, 192, 12
        $region36: #{tpu_custom_call.1} parent=27 // pred_fallthru
          _
        // Predicated region
        $region37: #{tpu_custom_call.1} parent=27 // pred_check
          %p348 = pneg %p161
        $region38: #{tpu_custom_call.1} parent=27 // pred_check_branch
          %350 = sbr.rel (%p348) target = $region40
        $region39: #{tpu_custom_call.1} parent=27 // pred_region
          %p351 = scmp.lt.s32.totalorder %s26, 1
          %s352 = scalar_select %p351, %s26, 1
          %s353 = smul.addr %s352, 3
          %s354 = scalar_lea.vmem %s5, %s353
        $region40: #{tpu_custom_call.1} parent=27 // pred_fallthru
          _
        // Predicated region
        $region41: #{tpu_custom_call.1} parent=27 // pred_check
          %p355 = pneg %p187
        $region42: #{tpu_custom_call.1} parent=27 // pred_check_branch
          %357 = sbr.rel (%p355) target = $region44
        $region43: #{tpu_custom_call.1} parent=27 // pred_region
          %s358 = sand.u32 %s26, 1
          %s359 = scalar_lea.sflag [#allocation7], %s358
          %s360 = sand.u32 %s177, 1
          %s361 = smul.addr %s360, 64
          %s362 = scalar_lea.vmem [#allocation6], %s361
          %s364 = ssub.s32 1024, 1024
          %365 = vsyncadd %s359, %s364
          %s366 = smul.addr %s26, 16
          %s367 = smul.addr %s366, 64
          %s368 = scalar_lea.hbm %s6, %s367
          %s369 = sshll.u32 %s362, 4
          %s370 = int_to_ptr.vmem [resolvable:$true] %s369
          %375 = dma.hbm_to_vmem [thread:$0]  %s368, 1024, %s370, %s359, 64, 64, 4
        $region44: #{tpu_custom_call.1} parent=27 // pred_fallthru
          _
        // Predicated region
        $region45: #{tpu_custom_call.1} parent=27 // pred_check
          %p376 = pneg %p213
        $region46: #{tpu_custom_call.1} parent=27 // pred_check_branch
          %378 = sbr.rel (%p376) target = $region48
        $region47: #{tpu_custom_call.1} parent=27 // pred_region
          %s379 = sand.u32 %s26, 1
          %s380 = scalar_lea.sflag [#allocation7], %s379
          %s381 = sand.u32 %s203, 1
          %s382 = smul.addr %s381, 256
          %s383 = scalar_lea.vmem [#allocation8], %s382
          %s385 = ssub.s32 4096, 4096
          %386 = vsyncadd %s380, %s385
          %s387 = smul.addr %s26, 64
          %s388 = smul.addr %s387, 64
          %s389 = scalar_lea.hbm %s7, %s388
          %s390 = sshll.u32 %s383, 4
          %s391 = int_to_ptr.vmem [resolvable:$true] %s390
          %396 = dma.hbm_to_vmem [thread:$0]  %s389, 4096, %s391, %s380, 256, 256, 16
        $region48: #{tpu_custom_call.1} parent=27 // pred_fallthru
          _
        // Predicated region
        $region49: #{tpu_custom_call.1} parent=27 // pred_check
          %p397 = pneg %p239
        $region50: #{tpu_custom_call.1} parent=27 // pred_check_branch
          %399 = sbr.rel (%p397) target = $region52
        $region51: #{tpu_custom_call.1} parent=27 // pred_region
          %p400 = scmp.lt.s32.totalorder %s26, 1
          %s401 = scalar_select %p400, %s26, 1
          %s402 = smul.addr %s401, 4
          %s403 = scalar_lea.vmem %s8, %s402
        $region52: #{tpu_custom_call.1} parent=27 // pred_fallthru
          _
        // Predicated region
        $region53: #{tpu_custom_call.1} parent=27 // pred_check
          %p404 = pneg %p265
        $region54: #{tpu_custom_call.1} parent=27 // pred_check_branch
          %406 = sbr.rel (%p404) target = $region56
        $region55: #{tpu_custom_call.1} parent=27 // pred_region
          %s407 = sand.u32 %s255, 1
          %s408 = scalar_lea.sflag [#allocation10], %s407
          %s409 = sand.u32 %s255, 1
          %s410 = smul.addr %s409, 256
          %s411 = scalar_lea.vmem [#allocation9], %s410
          %s413 = ssub.s32 4096, 4096
          %414 = vsyncadd %s408, %s413
          %s415 = smul.addr %s26, 64
          %s416 = smul.addr %s415, 64
          %s417 = scalar_lea.hbm %s9, %s416
          %s418 = sshll.u32 %s411, 4
          %s419 = int_to_ptr.vmem [resolvable:$true] %s418
          %424 = dma.hbm_to_vmem [thread:$0]  %s417, 4096, %s419, %s408, 64, 64, 4
        $region56: #{tpu_custom_call.1} parent=27 // pred_fallthru
          _
      $region28: #{tpu_custom_call.1} parent=5 // pred_fallthru
        _
      %p425 = scmp.le.s32.totalorder 1, %s26
      %p426 = scmp.lt.s32.totalorder %s26, 3
      %p427 = pnand %p425, %p426
      %p428 = pneg %p427
      // Predicated region
      $region57: #{tpu_custom_call.1} parent=5 // pred_check
        _
      $region58: #{tpu_custom_call.1} parent=5 // pred_check_branch
        %430 = sbr.rel (%p427) target = $region60
      $region59: #{tpu_custom_call.1} parent=5 // pred_region
        %s431 = ssub.s32 %s26, 1
        %s432 = sand.u32 %s128, 1
        %s433 = scalar_lea.sflag [#allocation4], %s432
        %s434 = sand.u32 %s128, 1
        %s435 = smul.addr %s434, 192
        %s436 = scalar_lea.vmem [#allocation3], %s435
        // Predicated region
        $region61: #{tpu_custom_call.1} parent=59 // pred_check
          %p437 = pneg %p141
        $region62: #{tpu_custom_call.1} parent=59 // pred_check_branch
          %439 = sbr.rel (%p437) target = $region64
        $region63: #{tpu_custom_call.1} parent=59 // pred_region
          %440 = dma.done %s433, 3072
        $region64: #{tpu_custom_call.1} parent=59 // pred_fallthru
          _
        %s441 = sand.u32 %s31, 1
        %s442 = scalar_lea.sflag [#allocation7], %s441
        %s443 = sand.u32 %s180, 1
        %s444 = smul.addr %s443, 64
        %s445 = scalar_lea.vmem [#allocation6], %s444
        // Predicated region
        $region65: #{tpu_custom_call.1} parent=59 // pred_check
          %p446 = pneg %p193
        $region66: #{tpu_custom_call.1} parent=59 // pred_check_branch
          %448 = sbr.rel (%p446) target = $region68
        $region67: #{tpu_custom_call.1} parent=59 // pred_region
          %449 = dma.done %s442, 1024
        $region68: #{tpu_custom_call.1} parent=59 // pred_fallthru
          _
        %s450 = sand.u32 %s31, 1
        %s451 = scalar_lea.sflag [#allocation7], %s450
        %s452 = sand.u32 %s206, 1
        %s453 = smul.addr %s452, 256
        %s454 = scalar_lea.vmem [#allocation8], %s453
        // Predicated region
        $region69: #{tpu_custom_call.1} parent=59 // pred_check
          %p455 = pneg %p219
        $region70: #{tpu_custom_call.1} parent=59 // pred_check_branch
          %457 = sbr.rel (%p455) target = $region72
        $region71: #{tpu_custom_call.1} parent=59 // pred_region
          %458 = dma.done %s451, 4096
        $region72: #{tpu_custom_call.1} parent=59 // pred_fallthru
          _
        %s459 = sand.u32 %s258, 1
        %s460 = scalar_lea.sflag [#allocation10], %s459
        %s461 = sand.u32 %s258, 1
        %s462 = smul.addr %s461, 256
        %s463 = scalar_lea.vmem [#allocation9], %s462
        // Predicated region
        $region73: #{tpu_custom_call.1} parent=59 // pred_check
          %p464 = pneg %p271
        $region74: #{tpu_custom_call.1} parent=59 // pred_check_branch
          %466 = sbr.rel (%p464) target = $region76
        $region75: #{tpu_custom_call.1} parent=59 // pred_region
          %467 = dma.done %s460, 4096
        $region76: #{tpu_custom_call.1} parent=59 // pred_fallthru
          _
        %p468 = pneg %p47
        %p469 = pneg %p44
        %p470 = pneg %p68
        %p471 = pneg %p65
        %p472 = pneg %p89
        %p473 = pneg %p86
        %p474 = scmp.lt.s32.totalorder %s31, 1
        %s475 = scalar_select %p474, %s31, 1
        %s476 = smul.addr %s475, 8
        %s477 = scalar_lea.vmem %s3, %s476
        %p478 = pneg %p115
        %p479 = pneg %p112
        %s480 = sand.u32 %s128, 1
        %s481 = scalar_lea.sflag [#allocation4], %s480
        %s482 = sand.u32 %s128, 1
        %s483 = smul.addr %s482, 192
        %s484 = scalar_lea.vmem [#allocation3], %s483
        %p485 = pneg %p141
        %p486 = pneg %p138
        %p487 = scmp.lt.s32.totalorder %s31, 1
        %s488 = scalar_select %p487, %s31, 1
        %s489 = smul.addr %s488, 3
        %s490 = scalar_lea.vmem %s5, %s489
        %p491 = pneg %p167
        %p492 = pneg %p164
        %s493 = sand.u32 %s31, 1
        %s494 = scalar_lea.sflag [#allocation7], %s493
        %s495 = sand.u32 %s180, 1
        %s496 = smul.addr %s495, 64
        %s497 = scalar_lea.vmem [#allocation6], %s496
        %p498 = pneg %p193
        %p499 = pneg %p190
        %s500 = sand.u32 %s31, 1
        %s501 = scalar_lea.sflag [#allocation7], %s500
        %s502 = sand.u32 %s206, 1
        %s503 = smul.addr %s502, 256
        %s504 = scalar_lea.vmem [#allocation8], %s503
        %p505 = pneg %p219
        %p506 = pneg %p216
        %p507 = scmp.lt.s32.totalorder %s31, 1
        %s508 = scalar_select %p507, %s31, 1
        %s509 = smul.addr %s508, 4
        %s510 = scalar_lea.vmem %s8, %s509
        %p511 = pneg %p245
        %p512 = pneg %p242
        %s513 = sand.u32 %s258, 1
        %s514 = scalar_lea.sflag [#allocation10], %s513
        %s515 = sand.u32 %s258, 1
        %s516 = smul.addr %s515, 256
        %s517 = scalar_lea.vmem [#allocation9], %s516
        %p518 = pneg %p271
        %p519 = pneg %p268
        %p520 = pneg %p292
        %p521 = pneg %p289
        %p522 = scmp.lt.s32.totalorder %s31, 1
        %s523 = scalar_select %p522, %s31, 1
        %s524 = smul.addr %s523, 8
        %s525 = scalar_lea.vmem %s3, %s524
        %p526 = scmp.lt.s32.totalorder %s31, 1
        %s527 = scalar_select %p526, %s31, 1
        %s528 = smul.addr %s527, 3
        %s529 = scalar_lea.vmem %s5, %s528
        %p530 = scmp.lt.s32.totalorder %s31, 1
        %s531 = scalar_select %p530, %s31, 1
        %s532 = smul.addr %s531, 4
        %s533 = scalar_lea.vmem %s8, %s532
        %p535 = scmp.eq.s32.totalorder %s31, 0
        // Predicated region
        $region77: #{tpu_custom_call.1} parent=59 // pred_check
          %p536 = pneg %p535
        $region78: #{tpu_custom_call.1} parent=59 // pred_check_branch
          %538 = sbr.rel (%p536) target = $region80
        $region79: #{tpu_custom_call.1} parent=59 // pred_region
          %v539 = vld [vmem:[%s0] sm:$0xff]
          %540 = vst [vmem:[#allocation2] sm:$0xff] %v539
        $region80: #{tpu_custom_call.1} parent=59 // pred_fallthru
          _
        %v541 = vld [vmem:[#allocation2] sm:$0xff]
        %v542 = vld [vmem:[%s525] sm:$0x3f]
        %v543 = vld [vmem:[%s1] sm:$0xff]
        %544 = vadd.xlane.f32.xlu0 %v541
        %v545 = vpop.xlane.xlu0 %544
        %v546 = vrcp.pop 128.0
        %v547 = vmul.f32 %v545, %v546
        %v548 = vsub.f32 %v541, %v547
        %v549 = vmul.f32 %v548, %v548
        %550 = vadd.xlane.f32.xlu0 %v549
        %v551 = vpop.xlane.xlu0 %550
        %v552 = vmul.f32 %v551, %v546
        %v553 = vadd.f32 %v552, 1e-05
        %v554 = vrsqrt.pop %v553
        %v555 = vmul.f32 %v548, %v554
        %v556 = vlaneseq
        %v557 = vshrl.u32 %v556, 7
        %v558 = vsub.s32 0, %v557
        %v559 = vrot.slane %v542, %v558
        %v560 = vmul.f32 %v555, %v559
        %v561 = vlaneseq
        %v562 = vshrl.u32 %v561, 7
        %v563 = vsub.s32 1, %v562
        %v564 = vrot.slane %v542, %v563
        %v565 = vadd.f32 %v560, %v564
        %v566 = vpack.c.bf16 %v565, %v565
        %v567 = vld [vmem:[%s436] sm:$0xff]
        %v568 = vld [vmem:[%s436 + $0x8] sm:$0xf]
        %v569 = vld [vmem:[%s436 + $0xc] sm:$0xff]
        %v570 = vld [vmem:[%s436 + $0x14] sm:$0xf]
        %v571 = vld [vmem:[%s436 + $0x18] sm:$0xff]
        %v572 = vld [vmem:[%s436 + $0x20] sm:$0xf]
        %v573 = vld [vmem:[%s436 + $0x24] sm:$0xff]
        %v574 = vld [vmem:[%s436 + $0x2c] sm:$0xf]
        %v575 = vld [vmem:[%s436 + $0x30] sm:$0xff]
        %v576 = vld [vmem:[%s436 + $0x38] sm:$0xf]
        %v577 = vld [vmem:[%s436 + $0x3c] sm:$0xff]
        %v578 = vld [vmem:[%s436 + $0x44] sm:$0xf]
        %v579 = vld [vmem:[%s436 + $0x48] sm:$0xff]
        %v580 = vld [vmem:[%s436 + $0x50] sm:$0xf]
        %v581 = vld [vmem:[%s436 + $0x54] sm:$0xff]
        %v582 = vld [vmem:[%s436 + $0x5c] sm:$0xf]
        %v583 = vld [vmem:[%s436 + $0x60] sm:$0xff]
        %v584 = vld [vmem:[%s436 + $0x68] sm:$0xf]
        %v585 = vld [vmem:[%s436 + $0x6c] sm:$0xff]
        %v586 = vld [vmem:[%s436 + $0x74] sm:$0xf]
        %v587 = vld [vmem:[%s436 + $0x78] sm:$0xff]
        %v588 = vld [vmem:[%s436 + $0x80] sm:$0xf]
        %v589 = vld [vmem:[%s436 + $0x84] sm:$0xff]
        %v590 = vld [vmem:[%s436 + $0x8c] sm:$0xf]
        %v591 = vld [vmem:[%s436 + $0x90] sm:$0xff]
        %v592 = vld [vmem:[%s436 + $0x98] sm:$0xf]
        %v593 = vld [vmem:[%s436 + $0x9c] sm:$0xff]
        %v594 = vld [vmem:[%s436 + $0xa4] sm:$0xf]
        %v595 = vld [vmem:[%s436 + $0xa8] sm:$0xff]
        %v596 = vld [vmem:[%s436 + $0xb0] sm:$0xf]
        %v597 = vld [vmem:[%s436 + $0xb4] sm:$0xff]
        %v598 = vld [vmem:[%s436 + $0xbc] sm:$0xf]
        %v599 = vld [vmem:[%s529] sm:$0x7]
        %v601 = vlaneseq
        %v602 = vshrl.u32 %v601, 7
        %v603 = vsub.s32 0, %v602
        %v604 = vrot.slane %v599, %v603
        %v605 = vlaneseq
        %v606 = vshrl.u32 %v605, 7
        %v607 = vsub.s32 1, %v606
        %v608 = vrot.slane %v599, %v607
        %v609 = vlaneseq
        %v610 = vshrl.u32 %v609, 7
        %v611 = vsub.s32 2, %v610
        %v612 = vrot.slane %v599, %v611
        %v648 = vunpack.c.l.b16 %v567
        %v649 = vunpack.c.h.b16 %v567
        %v650 = vunpack.c.l.b16 %v568
        %v651 = vunpack.c.l.b16 %v569
        %v652 = vunpack.c.h.b16 %v569
        %v653 = vunpack.c.l.b16 %v570
        %v654 = vunpack.c.l.b16 %v571
        %v655 = vunpack.c.h.b16 %v571
        %v656 = vunpack.c.l.b16 %v572
        %v657 = vunpack.c.l.b16 %v573
        %v658 = vunpack.c.h.b16 %v573
        %v659 = vunpack.c.l.b16 %v574
        %v660 = vunpack.c.l.b16 %v575
        %v661 = vunpack.c.h.b16 %v575
        %v662 = vunpack.c.l.b16 %v576
        %v663 = vunpack.c.l.b16 %v577
        %v664 = vunpack.c.h.b16 %v577
        %v665 = vunpack.c.l.b16 %v578
        %v666 = vunpack.c.l.b16 %v579
        %v667 = vunpack.c.h.b16 %v579
        %v668 = vunpack.c.l.b16 %v580
        %v669 = vunpack.c.l.b16 %v581
        %v670 = vunpack.c.h.b16 %v581
        %v671 = vunpack.c.l.b16 %v582
        %v672 = vunpack.c.l.b16 %v583
        %v673 = vunpack.c.h.b16 %v583
        %v674 = vunpack.c.l.b16 %v584
        %v675 = vunpack.c.l.b16 %v585
        %v676 = vunpack.c.h.b16 %v585
        %v677 = vunpack.c.l.b16 %v586
        %v678 = vunpack.c.l.b16 %v587
        %v679 = vunpack.c.h.b16 %v587
        %v680 = vunpack.c.l.b16 %v588
        %v681 = vunpack.c.l.b16 %v589
        %v682 = vunpack.c.h.b16 %v589
        %v683 = vunpack.c.l.b16 %v590
        %v684 = vunpack.c.l.b16 %v591
        %v685 = vunpack.c.h.b16 %v591
        %v686 = vunpack.c.l.b16 %v592
        %v687 = vunpack.c.l.b16 %v593
        %v688 = vunpack.c.h.b16 %v593
        %v689 = vunpack.c.l.b16 %v594
        %v690 = vunpack.c.l.b16 %v595
        %v691 = vunpack.c.h.b16 %v595
        %v692 = vunpack.c.l.b16 %v596
        %v693 = vunpack.c.l.b16 %v597
        %v694 = vunpack.c.h.b16 %v597
        %v695 = vunpack.c.l.b16 %v598
        %v696 = vpack.c.b16 %v651, %v648
        %v697 = vpack.c.b16 %v652, %v649
        %v698 = vpack.c.b16 %v653, %v650
        %v699 = vpack.c.b16 %v657, %v654
        %v700 = vpack.c.b16 %v658, %v655
        %v701 = vpack.c.b16 %v659, %v656
        %v702 = vpack.c.b16 %v663, %v660
        %v703 = vpack.c.b16 %v664, %v661
        %v704 = vpack.c.b16 %v665, %v662
        %v705 = vpack.c.b16 %v669, %v666
        %v706 = vpack.c.b16 %v670, %v667
        %v707 = vpack.c.b16 %v671, %v668
        %v708 = vpack.c.b16 %v675, %v672
        %v709 = vpack.c.b16 %v676, %v673
        %v710 = vpack.c.b16 %v677, %v674
        %v711 = vpack.c.b16 %v681, %v678
        %v712 = vpack.c.b16 %v682, %v679
        %v713 = vpack.c.b16 %v683, %v680
        %v714 = vpack.c.b16 %v687, %v684
        %v715 = vpack.c.b16 %v688, %v685
        %v716 = vpack.c.b16 %v689, %v686
        %v717 = vpack.c.b16 %v693, %v690
        %v718 = vpack.c.b16 %v694, %v691
        %v719 = vpack.c.b16 %v695, %v692
        %744 = vmatprep.subr.bf16.mxu0 %v697
        %745 = vmatpush1.bf16.msra.mxu0 %v696
        %746 = vmatprep.subr.bf16.mxu0 %v700
        %747 = vmatpush1.bf16.msra.mxu0 %v699
        %748 = vmatprep.subr.bf16.mxu0 %v703
        %749 = vmatpush1.bf16.msra.mxu0 %v702
        %750 = vmatprep.subr.bf16.mxu0 %v706
        %751 = vmatpush1.bf16.msra.mxu0 %v705
        %752 = vmatprep.subr.bf16.mxu0 %v709
        %753 = vmatpush1.bf16.msra.mxu0 %v708
        %754 = vmatprep.subr.bf16.mxu0 %v712
        %755 = vmatpush1.bf16.msra.mxu0 %v711
        %756 = vmatprep.subr.bf16.mxu0 %v715
        %757 = vmatpush1.bf16.msra.mxu0 %v714
        %758 = vmatprep.subr.bf16.mxu0 %v718
        %759 = vmatpush1.bf16.msra.mxu0 %v717
        %760 = vmatprep.subr.bf16.mxu0 0
        %761 = vmatpush1.bf16.msra.mxu0 0
        %762 = vmatprep.subr.bf16.mxu0 0
        %763 = vmatpush1.bf16.msra.mxu0 0
        %764 = vmatprep.subr.bf16.mxu0 0
        %765 = vmatpush1.bf16.msra.mxu0 0
        %766 = vmatprep.subr.bf16.mxu0 0
        %767 = vmatpush1.bf16.msra.mxu0 0
        %768 = vmatprep.subr.bf16.mxu0 0
        %769 = vmatpush1.bf16.msra.mxu0 0
        %770 = vmatprep.subr.bf16.mxu0 0
        %771 = vmatpush1.bf16.msra.mxu0 0
        %772 = vmatprep.subr.bf16.mxu0 0
        %773 = vmatpush1.bf16.msra.mxu0 0
        %774 = vmatprep.subr.bf16.mxu0 0
        %775 = vmatpush1.bf16.msra.mxu0 0
        %776 = vmatprep.mubr.bf16.mxu0 0
        %777 = vmatmul.mubr.bf16.gmra.mrb[0].mxu0 %v566
        %v778 = vpop.f32.mrb[0].mxu0
        %v779 = vadd.f32 %v604, %v778
        %v780 = vpop.f32.mrb[0].mxu0
        %v781 = vadd.f32 %v608, %v780
        %v782 = vpop.f32.mrb[0].mxu0
        %v783 = vpop.f32.mrb[0].mxu0
        %784 = vdwg.mxu0
        %785 = vmatprep.subr.bf16.mxu0 0
        %786 = vmatpush1.bf16.msra.mxu0 %v698
        %787 = vmatprep.subr.bf16.mxu0 0
        %788 = vmatpush1.bf16.msra.mxu0 %v701
        %789 = vmatprep.subr.bf16.mxu0 0
        %790 = vmatpush1.bf16.msra.mxu0 %v704
        %791 = vmatprep.subr.bf16.mxu0 0
        %792 = vmatpush1.bf16.msra.mxu0 %v707
        %793 = vmatprep.subr.bf16.mxu0 0
        %794 = vmatpush1.bf16.msra.mxu0 %v710
        %795 = vmatprep.subr.bf16.mxu0 0
        %796 = vmatpush1.bf16.msra.mxu0 %v713
        %797 = vmatprep.subr.bf16.mxu0 0
        %798 = vmatpush1.bf16.msra.mxu0 %v716
        %799 = vmatprep.subr.bf16.mxu0 0
        %800 = vmatpush1.bf16.msra.mxu0 %v719
        %801 = vmatprep.subr.bf16.mxu0 0
        %802 = vmatpush1.bf16.msra.mxu0 0
        %803 = vmatprep.subr.bf16.mxu0 0
        %804 = vmatpush1.bf16.msra.mxu0 0
        %805 = vmatprep.subr.bf16.mxu0 0
        %806 = vmatpush1.bf16.msra.mxu0 0
        %807 = vmatprep.subr.bf16.mxu0 0
        %808 = vmatpush1.bf16.msra.mxu0 0
        %809 = vmatprep.subr.bf16.mxu0 0
        %810 = vmatpush1.bf16.msra.mxu0 0
        %811 = vmatprep.subr.bf16.mxu0 0
        %812 = vmatpush1.bf16.msra.mxu0 0
        %813 = vmatprep.subr.bf16.mxu0 0
        %814 = vmatpush1.bf16.msra.mxu0 0
        %815 = vmatprep.subr.bf16.mxu0 0
        %816 = vmatpush1.bf16.msra.mxu0 0
        %817 = vmatprep.mubr.bf16.mxu0 0
        %818 = vmatmul.mubr.bf16.gmra.mrb[0].mxu0 %v566
        %v819 = vpop.f32.mrb[0].mxu0
        %v820 = vadd.f32 %v612, %v819
        %v821 = vpop.f32.mrb[0].mxu0
        %v822 = vpop.f32.mrb[0].mxu0
        %v823 = vpop.f32.mrb[0].mxu0
        %824 = vdwg.mxu0
        %vm825 = vcmask 261120
        %v827 = vsel %vm825, %v779, 0
        %v830 = vsel %vm825, %v781, 0
        %832 = vmatprep.subr.mxu0 0.0
        %833 = vmatpush1.xpose.msra.mxu0 %v830
        %834 = vmatprep.subr.mxu0 0.0
        %835 = vmatpush1.xpose.msra.mxu0 0.0
        %836 = vmatprep.subr.mxu0 0.0
        %837 = vmatpush1.xpose.msra.mxu0 0.0
        %838 = vmatprep.subr.mxu0 0.0
        %839 = vmatpush1.xpose.msra.mxu0 0.0
        %840 = vmatprep.subr.mxu0 0.0
        %841 = vmatpush1.xpose.msra.mxu0 0.0
        %842 = vmatprep.subr.mxu0 0.0
        %843 = vmatpush1.xpose.msra.mxu0 0.0
        %844 = vmatprep.subr.mxu0 0.0
        %845 = vmatpush1.xpose.msra.mxu0 0.0
        %846 = vmatprep.subr.mxu0 0.0
        %847 = vmatpush1.xpose.msra.mxu0 0.0
        %848 = vmatprep.subr.mxu0 0.0
        %849 = vmatpush1.xpose.msra.mxu0 0.0
        %850 = vmatprep.subr.mxu0 0.0
        %851 = vmatpush1.xpose.msra.mxu0 0.0
        %852 = vmatprep.subr.mxu0 0.0
        %853 = vmatpush1.xpose.msra.mxu0 0.0
        %854 = vmatprep.subr.mxu0 0.0
        %855 = vmatpush1.xpose.msra.mxu0 0.0
        %856 = vmatprep.subr.mxu0 0.0
        %857 = vmatpush1.xpose.msra.mxu0 0.0
        %858 = vmatprep.subr.mxu0 0.0
        %859 = vmatpush1.xpose.msra.mxu0 0.0
        %860 = vmatprep.subr.mxu0 0.0
        %861 = vmatpush1.xpose.msra.mxu0 0.0
        %862 = vmatprep.subr.mxu0 0.0
        %863 = vmatpush1.xpose.msra.mxu0 0.0
        %864 = vmatprep.subr.mxu0 0.0
        %865 = vmatpush1.xpose.msra.mxu0 0.0
        %866 = vmatprep.subr.mxu0 0.0
        %867 = vmatpush1.xpose.msra.mxu0 0.0
        %868 = vmatprep.subr.mxu0 0.0
        %869 = vmatpush1.xpose.msra.mxu0 0.0
        %870 = vmatprep.subr.mxu0 0.0
        %871 = vmatpush1.xpose.msra.mxu0 0.0
        %872 = vmatprep.subr.mxu0 0.0
        %873 = vmatpush1.xpose.msra.mxu0 0.0
        %874 = vmatprep.subr.mxu0 0.0
        %875 = vmatpush1.xpose.msra.mxu0 0.0
        %876 = vmatprep.subr.mxu0 0.0
        %877 = vmatpush1.xpose.msra.mxu0 0.0
        %878 = vmatprep.subr.mxu0 0.0
        %879 = vmatpush1.xpose.msra.mxu0 0.0
        %880 = vmatprep.subr.mxu0 0.0
        %881 = vmatpush1.xpose.msra.mxu0 0.0
        %882 = vmatprep.subr.mxu0 0.0
        %883 = vmatpush1.xpose.msra.mxu0 0.0
        %884 = vmatprep.subr.mxu0 0.0
        %885 = vmatpush1.xpose.msra.mxu0 0.0
        %886 = vmatprep.subr.mxu0 0.0
        %887 = vmatpush1.xpose.msra.mxu0 0.0
        %888 = vmatprep.subr.mxu0 0.0
        %889 = vmatpush1.xpose.msra.mxu0 0.0
        %890 = vmatprep.subr.mxu0 0.0
        %891 = vmatpush1.xpose.msra.mxu0 0.0
        %892 = vmatprep.subr.mxu0 0.0
        %893 = vmatpush1.xpose.msra.mxu0 0.0
        %894 = vmatprep.subr.mxu0 0.0
        %895 = vmatpush1.xpose.msra.mxu0 0.0
        %896 = vmatprep.mubr.f32.mxu0 0.0
        %897 = vmatmul.mubr.f32.gmra.mrb[0].mxu0 %v827
        %v898 = vpop.f32.mrb[0].mxu0
        %v899 = vadd.f32 %v543, %v898
        %v900 = vpop.f32.mrb[0].mxu0
        %901 = vdwg.mxu0
        %vm902 = vcmask 64512
        %v903 = vsel %vm902, %v899, -inf
        %904 = vmax.xlane.f32.xlu0 %v903
        %v905 = vpop.xlane.xlu0 %904
        %v906 = vsub.f32 %v899, %v905
        %v907 = vmul.f32 %v906, 1.442695
        %v908 = vpow.pop %v907
        %v909 = vsel %vm902, %v908, 0.0
        %910 = vadd.xlane.f32.xlu0 %v909
        %v911 = vpop.xlane.xlu0 %910
        %v912 = vrcp.pop %v911
        %v913 = vmul.f32 %v908, %v912
        %v915 = vsel %vm902, %v913, 0
        %917 = vmatprep.subr.mxu0 0.0
        %918 = vmatpush1.msra.mxu0 %v820
        %919 = vmatprep.subr.mxu0 0.0
        %920 = vmatpush1.msra.mxu0 0.0
        %921 = vmatprep.subr.mxu0 0.0
        %922 = vmatpush1.msra.mxu0 0.0
        %923 = vmatprep.subr.mxu0 0.0
        %924 = vmatpush1.msra.mxu0 0.0
        %925 = vmatprep.subr.mxu0 0.0
        %926 = vmatpush1.msra.mxu0 0.0
        %927 = vmatprep.subr.mxu0 0.0
        %928 = vmatpush1.msra.mxu0 0.0
        %929 = vmatprep.subr.mxu0 0.0
        %930 = vmatpush1.msra.mxu0 0.0
        %931 = vmatprep.subr.mxu0 0.0
        %932 = vmatpush1.msra.mxu0 0.0
        %933 = vmatprep.subr.mxu0 0.0
        %934 = vmatpush1.msra.mxu0 0.0
        %935 = vmatprep.subr.mxu0 0.0
        %936 = vmatpush1.msra.mxu0 0.0
        %937 = vmatprep.subr.mxu0 0.0
        %938 = vmatpush1.msra.mxu0 0.0
        %939 = vmatprep.subr.mxu0 0.0
        %940 = vmatpush1.msra.mxu0 0.0
        %941 = vmatprep.subr.mxu0 0.0
        %942 = vmatpush1.msra.mxu0 0.0
        %943 = vmatprep.subr.mxu0 0.0
        %944 = vmatpush1.msra.mxu0 0.0
        %945 = vmatprep.subr.mxu0 0.0
        %946 = vmatpush1.msra.mxu0 0.0
        %947 = vmatprep.subr.mxu0 0.0
        %948 = vmatpush1.msra.mxu0 0.0
        %949 = vmatprep.subr.mxu0 0.0
        %950 = vmatpush1.msra.mxu0 0.0
        %951 = vmatprep.subr.mxu0 0.0
        %952 = vmatpush1.msra.mxu0 0.0
        %953 = vmatprep.subr.mxu0 0.0
        %954 = vmatpush1.msra.mxu0 0.0
        %955 = vmatprep.subr.mxu0 0.0
        %956 = vmatpush1.msra.mxu0 0.0
        %957 = vmatprep.subr.mxu0 0.0
        %958 = vmatpush1.msra.mxu0 0.0
        %959 = vmatprep.subr.mxu0 0.0
        %960 = vmatpush1.msra.mxu0 0.0
        %961 = vmatprep.subr.mxu0 0.0
        %962 = vmatpush1.msra.mxu0 0.0
        %963 = vmatprep.subr.mxu0 0.0
        %964 = vmatpush1.msra.mxu0 0.0
        %965 = vmatprep.subr.mxu0 0.0
        %966 = vmatpush1.msra.mxu0 0.0
        %967 = vmatprep.subr.mxu0 0.0
        %968 = vmatpush1.msra.mxu0 0.0
        %969 = vmatprep.subr.mxu0 0.0
        %970 = vmatpush1.msra.mxu0 0.0
        %971 = vmatprep.subr.mxu0 0.0
        %972 = vmatpush1.msra.mxu0 0.0
        %973 = vmatprep.subr.mxu0 0.0
        %974 = vmatpush1.msra.mxu0 0.0
        %975 = vmatprep.subr.mxu0 0.0
        %976 = vmatpush1.msra.mxu0 0.0
        %977 = vmatprep.subr.mxu0 0.0
        %978 = vmatpush1.msra.mxu0 0.0
        %979 = vmatprep.subr.mxu0 0.0
        %980 = vmatpush1.msra.mxu0 0.0
        %981 = vmatprep.mubr.f32.mxu0 0.0
        %982 = vmatmul.mubr.f32.gmra.mrb[0].mxu0 %v915
        %v983 = vpop.f32.mrb[0].mxu0
        %v984 = vadd.f32 0.0, %v983
        %v985 = vpop.f32.mrb[0].mxu0
        %986 = vdwg.mxu0
        %987 = vrot.lane.b32.xlu0 %v779, 96
        %v988 = vpop.permute.xlu0 %987
        %989 = vrot.lane.b32.xlu0 %v781, 96
        %v990 = vpop.permute.xlu0 %989
        %v991 = vsel %vm825, %v988, 0
        %v993 = vsel %vm825, %v990, 0
        %995 = vmatprep.subr.mxu0 0.0
        %996 = vmatpush1.xpose.msra.mxu0 %v993
        %997 = vmatprep.subr.mxu0 0.0
        %998 = vmatpush1.xpose.msra.mxu0 0.0
        %999 = vmatprep.subr.mxu0 0.0
        %1000 = vmatpush1.xpose.msra.mxu0 0.0
        %1001 = vmatprep.subr.mxu0 0.0
        %1002 = vmatpush1.xpose.msra.mxu0 0.0
        %1003 = vmatprep.subr.mxu0 0.0
        %1004 = vmatpush1.xpose.msra.mxu0 0.0
        %1005 = vmatprep.subr.mxu0 0.0
        %1006 = vmatpush1.xpose.msra.mxu0 0.0
        %1007 = vmatprep.subr.mxu0 0.0
        %1008 = vmatpush1.xpose.msra.mxu0 0.0
        %1009 = vmatprep.subr.mxu0 0.0
        %1010 = vmatpush1.xpose.msra.mxu0 0.0
        %1011 = vmatprep.subr.mxu0 0.0
        %1012 = vmatpush1.xpose.msra.mxu0 0.0
        %1013 = vmatprep.subr.mxu0 0.0
        %1014 = vmatpush1.xpose.msra.mxu0 0.0
        %1015 = vmatprep.subr.mxu0 0.0
        %1016 = vmatpush1.xpose.msra.mxu0 0.0
        %1017 = vmatprep.subr.mxu0 0.0
        %1018 = vmatpush1.xpose.msra.mxu0 0.0
        %1019 = vmatprep.subr.mxu0 0.0
        %1020 = vmatpush1.xpose.msra.mxu0 0.0
        %1021 = vmatprep.subr.mxu0 0.0
        %1022 = vmatpush1.xpose.msra.mxu0 0.0
        %1023 = vmatprep.subr.mxu0 0.0
        %1024 = vmatpush1.xpose.msra.mxu0 0.0
        %1025 = vmatprep.subr.mxu0 0.0
        %1026 = vmatpush1.xpose.msra.mxu0 0.0
        %1027 = vmatprep.subr.mxu0 0.0
        %1028 = vmatpush1.xpose.msra.mxu0 0.0
        %1029 = vmatprep.subr.mxu0 0.0
        %1030 = vmatpush1.xpose.msra.mxu0 0.0
        %1031 = vmatprep.subr.mxu0 0.0
        %1032 = vmatpush1.xpose.msra.mxu0 0.0
        %1033 = vmatprep.subr.mxu0 0.0
        %1034 = vmatpush1.xpose.msra.mxu0 0.0
        %1035 = vmatprep.subr.mxu0 0.0
        %1036 = vmatpush1.xpose.msra.mxu0 0.0
        %1037 = vmatprep.subr.mxu0 0.0
        %1038 = vmatpush1.xpose.msra.mxu0 0.0
        %1039 = vmatprep.subr.mxu0 0.0
        %1040 = vmatpush1.xpose.msra.mxu0 0.0
        %1041 = vmatprep.subr.mxu0 0.0
        %1042 = vmatpush1.xpose.msra.mxu0 0.0
        %1043 = vmatprep.subr.mxu0 0.0
        %1044 = vmatpush1.xpose.msra.mxu0 0.0
        %1045 = vmatprep.subr.mxu0 0.0
        %1046 = vmatpush1.xpose.msra.mxu0 0.0
        %1047 = vmatprep.subr.mxu0 0.0
        %1048 = vmatpush1.xpose.msra.mxu0 0.0
        %1049 = vmatprep.subr.mxu0 0.0
        %1050 = vmatpush1.xpose.msra.mxu0 0.0
        %1051 = vmatprep.subr.mxu0 0.0
        %1052 = vmatpush1.xpose.msra.mxu0 0.0
        %1053 = vmatprep.subr.mxu0 0.0
        %1054 = vmatpush1.xpose.msra.mxu0 0.0
        %1055 = vmatprep.subr.mxu0 0.0
        %1056 = vmatpush1.xpose.msra.mxu0 0.0
        %1057 = vmatprep.subr.mxu0 0.0
        %1058 = vmatpush1.xpose.msra.mxu0 0.0
        %1059 = vmatprep.mubr.f32.mxu0 0.0
        %1060 = vmatmul.mubr.f32.gmra.mrb[0].mxu0 %v991
        %v1061 = vpop.f32.mrb[0].mxu0
        %v1062 = vadd.f32 %v543, %v1061
        %v1063 = vpop.f32.mrb[0].mxu0
        %1064 = vdwg.mxu0
        %v1065 = vsel %vm902, %v1062, -inf
        %1066 = vmax.xlane.f32.xlu0 %v1065
        %v1067 = vpop.xlane.xlu0 %1066
        %v1068 = vsub.f32 %v1062, %v1067
        %v1069 = vmul.f32 %v1068, 1.442695
        %v1070 = vpow.pop %v1069
        %v1071 = vsel %vm902, %v1070, 0.0
        %1072 = vadd.xlane.f32.xlu0 %v1071
        %v1073 = vpop.xlane.xlu0 %1072
        %v1074 = vrcp.pop %v1073
        %v1075 = vmul.f32 %v1070, %v1074
        %1077 = vrot.lane.b32.xlu0 %v820, 96
        %v1078 = vpop.permute.xlu0 %1077
        %v1081 = vsel %vm902, %v1075, 0
        %1083 = vmatprep.subr.mxu0 0.0
        %1084 = vmatpush1.msra.mxu0 %v1078
        %1085 = vmatprep.subr.mxu0 0.0
        %1086 = vmatpush1.msra.mxu0 0.0
        %1087 = vmatprep.subr.mxu0 0.0
        %1088 = vmatpush1.msra.mxu0 0.0
        %1089 = vmatprep.subr.mxu0 0.0
        %1090 = vmatpush1.msra.mxu0 0.0
        %1091 = vmatprep.subr.mxu0 0.0
        %1092 = vmatpush1.msra.mxu0 0.0
        %1093 = vmatprep.subr.mxu0 0.0
        %1094 = vmatpush1.msra.mxu0 0.0
        %1095 = vmatprep.subr.mxu0 0.0
        %1096 = vmatpush1.msra.mxu0 0.0
        %1097 = vmatprep.subr.mxu0 0.0
        %1098 = vmatpush1.msra.mxu0 0.0
        %1099 = vmatprep.subr.mxu0 0.0
        %1100 = vmatpush1.msra.mxu0 0.0
        %1101 = vmatprep.subr.mxu0 0.0
        %1102 = vmatpush1.msra.mxu0 0.0
        %1103 = vmatprep.subr.mxu0 0.0
        %1104 = vmatpush1.msra.mxu0 0.0
        %1105 = vmatprep.subr.mxu0 0.0
        %1106 = vmatpush1.msra.mxu0 0.0
        %1107 = vmatprep.subr.mxu0 0.0
        %1108 = vmatpush1.msra.mxu0 0.0
        %1109 = vmatprep.subr.mxu0 0.0
        %1110 = vmatpush1.msra.mxu0 0.0
        %1111 = vmatprep.subr.mxu0 0.0
        %1112 = vmatpush1.msra.mxu0 0.0
        %1113 = vmatprep.subr.mxu0 0.0
        %1114 = vmatpush1.msra.mxu0 0.0
        %1115 = vmatprep.subr.mxu0 0.0
        %1116 = vmatpush1.msra.mxu0 0.0
        %1117 = vmatprep.subr.mxu0 0.0
        %1118 = vmatpush1.msra.mxu0 0.0
        %1119 = vmatprep.subr.mxu0 0.0
        %1120 = vmatpush1.msra.mxu0 0.0
        %1121 = vmatprep.subr.mxu0 0.0
        %1122 = vmatpush1.msra.mxu0 0.0
        %1123 = vmatprep.subr.mxu0 0.0
        %1124 = vmatpush1.msra.mxu0 0.0
        %1125 = vmatprep.subr.mxu0 0.0
        %1126 = vmatpush1.msra.mxu0 0.0
        %1127 = vmatprep.subr.mxu0 0.0
        %1128 = vmatpush1.msra.mxu0 0.0
        %1129 = vmatprep.subr.mxu0 0.0
        %1130 = vmatpush1.msra.mxu0 0.0
        %1131 = vmatprep.subr.mxu0 0.0
        %1132 = vmatpush1.msra.mxu0 0.0
        %1133 = vmatprep.subr.mxu0 0.0
        %1134 = vmatpush1.msra.mxu0 0.0
        %1135 = vmatprep.subr.mxu0 0.0
        %1136 = vmatpush1.msra.mxu0 0.0
        %1137 = vmatprep.subr.mxu0 0.0
        %1138 = vmatpush1.msra.mxu0 0.0
        %1139 = vmatprep.subr.mxu0 0.0
        %1140 = vmatpush1.msra.mxu0 0.0
        %1141 = vmatprep.subr.mxu0 0.0
        %1142 = vmatpush1.msra.mxu0 0.0
        %1143 = vmatprep.subr.mxu0 0.0
        %1144 = vmatpush1.msra.mxu0 0.0
        %1145 = vmatprep.subr.mxu0 0.0
        %1146 = vmatpush1.msra.mxu0 0.0
        %1147 = vmatprep.mubr.f32.mxu0 0.0
        %1148 = vmatmul.mubr.f32.gmra.mrb[0].mxu0 %v1081
        %v1149 = vpop.f32.mrb[0].mxu0
        %v1150 = vadd.f32 0.0, %v1149
        %v1151 = vpop.f32.mrb[0].mxu0
        %1152 = vdwg.mxu0
        %1153 = vrot.lane.b32.xlu0 %v779, 64
        %v1154 = vpop.permute.xlu0 %1153
        %1155 = vrot.lane.b32.xlu0 %v781, 64
        %v1156 = vpop.permute.xlu0 %1155
        %v1157 = vsel %vm825, %v1154, 0
        %v1159 = vsel %vm825, %v1156, 0
        %1161 = vmatprep.subr.mxu0 0.0
        %1162 = vmatpush1.xpose.msra.mxu0 %v1159
        %1163 = vmatprep.subr.mxu0 0.0
        %1164 = vmatpush1.xpose.msra.mxu0 0.0
        %1165 = vmatprep.subr.mxu0 0.0
        %1166 = vmatpush1.xpose.msra.mxu0 0.0
        %1167 = vmatprep.subr.mxu0 0.0
        %1168 = vmatpush1.xpose.msra.mxu0 0.0
        %1169 = vmatprep.subr.mxu0 0.0
        %1170 = vmatpush1.xpose.msra.mxu0 0.0
        %1171 = vmatprep.subr.mxu0 0.0
        %1172 = vmatpush1.xpose.msra.mxu0 0.0
        %1173 = vmatprep.subr.mxu0 0.0
        %1174 = vmatpush1.xpose.msra.mxu0 0.0
        %1175 = vmatprep.subr.mxu0 0.0
        %1176 = vmatpush1.xpose.msra.mxu0 0.0
        %1177 = vmatprep.subr.mxu0 0.0
        %1178 = vmatpush1.xpose.msra.mxu0 0.0
        %1179 = vmatprep.subr.mxu0 0.0
        %1180 = vmatpush1.xpose.msra.mxu0 0.0
        %1181 = vmatprep.subr.mxu0 0.0
        %1182 = vmatpush1.xpose.msra.mxu0 0.0
        %1183 = vmatprep.subr.mxu0 0.0
        %1184 = vmatpush1.xpose.msra.mxu0 0.0
        %1185 = vmatprep.subr.mxu0 0.0
        %1186 = vmatpush1.xpose.msra.mxu0 0.0
        %1187 = vmatprep.subr.mxu0 0.0
        %1188 = vmatpush1.xpose.msra.mxu0 0.0
        %1189 = vmatprep.subr.mxu0 0.0
        %1190 = vmatpush1.xpose.msra.mxu0 0.0
        %1191 = vmatprep.subr.mxu0 0.0
        %1192 = vmatpush1.xpose.msra.mxu0 0.0
        %1193 = vmatprep.subr.mxu0 0.0
        %1194 = vmatpush1.xpose.msra.mxu0 0.0
        %1195 = vmatprep.subr.mxu0 0.0
        %1196 = vmatpush1.xpose.msra.mxu0 0.0
        %1197 = vmatprep.subr.mxu0 0.0
        %1198 = vmatpush1.xpose.msra.mxu0 0.0
        %1199 = vmatprep.subr.mxu0 0.0
        %1200 = vmatpush1.xpose.msra.mxu0 0.0
        %1201 = vmatprep.subr.mxu0 0.0
        %1202 = vmatpush1.xpose.msra.mxu0 0.0
        %1203 = vmatprep.subr.mxu0 0.0
        %1204 = vmatpush1.xpose.msra.mxu0 0.0
        %1205 = vmatprep.subr.mxu0 0.0
        %1206 = vmatpush1.xpose.msra.mxu0 0.0
        %1207 = vmatprep.subr.mxu0 0.0
        %1208 = vmatpush1.xpose.msra.mxu0 0.0
        %1209 = vmatprep.subr.mxu0 0.0
        %1210 = vmatpush1.xpose.msra.mxu0 0.0
        %1211 = vmatprep.subr.mxu0 0.0
        %1212 = vmatpush1.xpose.msra.mxu0 0.0
        %1213 = vmatprep.subr.mxu0 0.0
        %1214 = vmatpush1.xpose.msra.mxu0 0.0
        %1215 = vmatprep.subr.mxu0 0.0
        %1216 = vmatpush1.xpose.msra.mxu0 0.0
        %1217 = vmatprep.subr.mxu0 0.0
        %1218 = vmatpush1.xpose.msra.mxu0 0.0
        %1219 = vmatprep.subr.mxu0 0.0
        %1220 = vmatpush1.xpose.msra.mxu0 0.0
        %1221 = vmatprep.subr.mxu0 0.0
        %1222 = vmatpush1.xpose.msra.mxu0 0.0
        %1223 = vmatprep.subr.mxu0 0.0
        %1224 = vmatpush1.xpose.msra.mxu0 0.0
        %1225 = vmatprep.mubr.f32.mxu0 0.0
        %1226 = vmatmul.mubr.f32.gmra.mrb[0].mxu0 %v1157
        %v1227 = vpop.f32.mrb[0].mxu0
        %v1228 = vadd.f32 %v543, %v1227
        %v1229 = vpop.f32.mrb[0].mxu0
        %1230 = vdwg.mxu0
        %v1231 = vsel %vm902, %v1228, -inf
        %1232 = vmax.xlane.f32.xlu0 %v1231
        %v1233 = vpop.xlane.xlu0 %1232
        %v1234 = vsub.f32 %v1228, %v1233
        %v1235 = vmul.f32 %v1234, 1.442695
        %v1236 = vpow.pop %v1235
        %v1237 = vsel %vm902, %v1236, 0.0
        %1238 = vadd.xlane.f32.xlu0 %v1237
        %v1239 = vpop.xlane.xlu0 %1238
        %v1240 = vrcp.pop %v1239
        %v1241 = vmul.f32 %v1236, %v1240
        %1242 = vrot.lane.b32.xlu0 %v820, 64
        %v1243 = vpop.permute.xlu0 %1242
        %v1246 = vsel %vm902, %v1241, 0
        %1248 = vmatprep.subr.mxu0 0.0
        %1249 = vmatpush1.msra.mxu0 %v1243
        %1250 = vmatprep.subr.mxu0 0.0
        %1251 = vmatpush1.msra.mxu0 0.0
        %1252 = vmatprep.subr.mxu0 0.0
        %1253 = vmatpush1.msra.mxu0 0.0
        %1254 = vmatprep.subr.mxu0 0.0
        %1255 = vmatpush1.msra.mxu0 0.0
        %1256 = vmatprep.subr.mxu0 0.0
        %1257 = vmatpush1.msra.mxu0 0.0
        %1258 = vmatprep.subr.mxu0 0.0
        %1259 = vmatpush1.msra.mxu0 0.0
        %1260 = vmatprep.subr.mxu0 0.0
        %1261 = vmatpush1.msra.mxu0 0.0
        %1262 = vmatprep.subr.mxu0 0.0
        %1263 = vmatpush1.msra.mxu0 0.0
        %1264 = vmatprep.subr.mxu0 0.0
        %1265 = vmatpush1.msra.mxu0 0.0
        %1266 = vmatprep.subr.mxu0 0.0
        %1267 = vmatpush1.msra.mxu0 0.0
        %1268 = vmatprep.subr.mxu0 0.0
        %1269 = vmatpush1.msra.mxu0 0.0
        %1270 = vmatprep.subr.mxu0 0.0
        %1271 = vmatpush1.msra.mxu0 0.0
        %1272 = vmatprep.subr.mxu0 0.0
        %1273 = vmatpush1.msra.mxu0 0.0
        %1274 = vmatprep.subr.mxu0 0.0
        %1275 = vmatpush1.msra.mxu0 0.0
        %1276 = vmatprep.subr.mxu0 0.0
        %1277 = vmatpush1.msra.mxu0 0.0
        %1278 = vmatprep.subr.mxu0 0.0
        %1279 = vmatpush1.msra.mxu0 0.0
        %1280 = vmatprep.subr.mxu0 0.0
        %1281 = vmatpush1.msra.mxu0 0.0
        %1282 = vmatprep.subr.mxu0 0.0
        %1283 = vmatpush1.msra.mxu0 0.0
        %1284 = vmatprep.subr.mxu0 0.0
        %1285 = vmatpush1.msra.mxu0 0.0
        %1286 = vmatprep.subr.mxu0 0.0
        %1287 = vmatpush1.msra.mxu0 0.0
        %1288 = vmatprep.subr.mxu0 0.0
        %1289 = vmatpush1.msra.mxu0 0.0
        %1290 = vmatprep.subr.mxu0 0.0
        %1291 = vmatpush1.msra.mxu0 0.0
        %1292 = vmatprep.subr.mxu0 0.0
        %1293 = vmatpush1.msra.mxu0 0.0
        %1294 = vmatprep.subr.mxu0 0.0
        %1295 = vmatpush1.msra.mxu0 0.0
        %1296 = vmatprep.subr.mxu0 0.0
        %1297 = vmatpush1.msra.mxu0 0.0
        %1298 = vmatprep.subr.mxu0 0.0
        %1299 = vmatpush1.msra.mxu0 0.0
        %1300 = vmatprep.subr.mxu0 0.0
        %1301 = vmatpush1.msra.mxu0 0.0
        %1302 = vmatprep.subr.mxu0 0.0
        %1303 = vmatpush1.msra.mxu0 0.0
        %1304 = vmatprep.subr.mxu0 0.0
        %1305 = vmatpush1.msra.mxu0 0.0
        %1306 = vmatprep.subr.mxu0 0.0
        %1307 = vmatpush1.msra.mxu0 0.0
        %1308 = vmatprep.subr.mxu0 0.0
        %1309 = vmatpush1.msra.mxu0 0.0
        %1310 = vmatprep.subr.mxu0 0.0
        %1311 = vmatpush1.msra.mxu0 0.0
        %1312 = vmatprep.mubr.f32.mxu0 0.0
        %1313 = vmatmul.mubr.f32.gmra.mrb[0].mxu0 %v1246
        %v1314 = vpop.f32.mrb[0].mxu0
        %v1315 = vadd.f32 0.0, %v1314
        %v1316 = vpop.f32.mrb[0].mxu0
        %1317 = vdwg.mxu0
        %1318 = vrot.lane.b32.xlu0 %v779, 32
        %v1319 = vpop.permute.xlu0 %1318
        %1320 = vrot.lane.b32.xlu0 %v781, 32
        %v1321 = vpop.permute.xlu0 %1320
        %v1322 = vsel %vm825, %v1319, 0
        %v1324 = vsel %vm825, %v1321, 0
        %1326 = vmatprep.subr.mxu0 0.0
        %1327 = vmatpush1.xpose.msra.mxu0 %v1324
        %1328 = vmatprep.subr.mxu0 0.0
        %1329 = vmatpush1.xpose.msra.mxu0 0.0
        %1330 = vmatprep.subr.mxu0 0.0
        %1331 = vmatpush1.xpose.msra.mxu0 0.0
        %1332 = vmatprep.subr.mxu0 0.0
        %1333 = vmatpush1.xpose.msra.mxu0 0.0
        %1334 = vmatprep.subr.mxu0 0.0
        %1335 = vmatpush1.xpose.msra.mxu0 0.0
        %1336 = vmatprep.subr.mxu0 0.0
        %1337 = vmatpush1.xpose.msra.mxu0 0.0
        %1338 = vmatprep.subr.mxu0 0.0
        %1339 = vmatpush1.xpose.msra.mxu0 0.0
        %1340 = vmatprep.subr.mxu0 0.0
        %1341 = vmatpush1.xpose.msra.mxu0 0.0
        %1342 = vmatprep.subr.mxu0 0.0
        %1343 = vmatpush1.xpose.msra.mxu0 0.0
        %1344 = vmatprep.subr.mxu0 0.0
        %1345 = vmatpush1.xpose.msra.mxu0 0.0
        %1346 = vmatprep.subr.mxu0 0.0
        %1347 = vmatpush1.xpose.msra.mxu0 0.0
        %1348 = vmatprep.subr.mxu0 0.0
        %1349 = vmatpush1.xpose.msra.mxu0 0.0
        %1350 = vmatprep.subr.mxu0 0.0
        %1351 = vmatpush1.xpose.msra.mxu0 0.0
        %1352 = vmatprep.subr.mxu0 0.0
        %1353 = vmatpush1.xpose.msra.mxu0 0.0
        %1354 = vmatprep.subr.mxu0 0.0
        %1355 = vmatpush1.xpose.msra.mxu0 0.0
        %1356 = vmatprep.subr.mxu0 0.0
        %1357 = vmatpush1.xpose.msra.mxu0 0.0
        %1358 = vmatprep.subr.mxu0 0.0
        %1359 = vmatpush1.xpose.msra.mxu0 0.0
        %1360 = vmatprep.subr.mxu0 0.0
        %1361 = vmatpush1.xpose.msra.mxu0 0.0
        %1362 = vmatprep.subr.mxu0 0.0
        %1363 = vmatpush1.xpose.msra.mxu0 0.0
        %1364 = vmatprep.subr.mxu0 0.0
        %1365 = vmatpush1.xpose.msra.mxu0 0.0
        %1366 = vmatprep.subr.mxu0 0.0
        %1367 = vmatpush1.xpose.msra.mxu0 0.0
        %1368 = vmatprep.subr.mxu0 0.0
        %1369 = vmatpush1.xpose.msra.mxu0 0.0
        %1370 = vmatprep.subr.mxu0 0.0
        %1371 = vmatpush1.xpose.msra.mxu0 0.0
        %1372 = vmatprep.subr.mxu0 0.0
        %1373 = vmatpush1.xpose.msra.mxu0 0.0
        %1374 = vmatprep.subr.mxu0 0.0
        %1375 = vmatpush1.xpose.msra.mxu0 0.0
        %1376 = vmatprep.subr.mxu0 0.0
        %1377 = vmatpush1.xpose.msra.mxu0 0.0
        %1378 = vmatprep.subr.mxu0 0.0
        %1379 = vmatpush1.xpose.msra.mxu0 0.0
        %1380 = vmatprep.subr.mxu0 0.0
        %1381 = vmatpush1.xpose.msra.mxu0 0.0
        %1382 = vmatprep.subr.mxu0 0.0
        %1383 = vmatpush1.xpose.msra.mxu0 0.0
        %1384 = vmatprep.subr.mxu0 0.0
        %1385 = vmatpush1.xpose.msra.mxu0 0.0
        %1386 = vmatprep.subr.mxu0 0.0
        %1387 = vmatpush1.xpose.msra.mxu0 0.0
        %1388 = vmatprep.subr.mxu0 0.0
        %1389 = vmatpush1.xpose.msra.mxu0 0.0
        %1390 = vmatprep.mubr.f32.mxu0 0.0
        %1391 = vmatmul.mubr.f32.gmra.mrb[0].mxu0 %v1322
        %v1392 = vpop.f32.mrb[0].mxu0
        %v1393 = vadd.f32 %v543, %v1392
        %v1394 = vpop.f32.mrb[0].mxu0
        %1395 = vdwg.mxu0
        %v1396 = vsel %vm902, %v1393, -inf
        %1397 = vmax.xlane.f32.xlu0 %v1396
        %v1398 = vpop.xlane.xlu0 %1397
        %v1399 = vsub.f32 %v1393, %v1398
        %v1400 = vmul.f32 %v1399, 1.442695
        %v1401 = vpow.pop %v1400
        %v1402 = vsel %vm902, %v1401, 0.0
        %1403 = vadd.xlane.f32.xlu0 %v1402
        %v1404 = vpop.xlane.xlu0 %1403
        %v1405 = vrcp.pop %v1404
        %v1406 = vmul.f32 %v1401, %v1405
        %1407 = vrot.lane.b32.xlu0 %v820, 32
        %v1408 = vpop.permute.xlu0 %1407
        %v1411 = vsel %vm902, %v1406, 0
        %1413 = vmatprep.subr.mxu0 0.0
        %1414 = vmatpush1.msra.mxu0 %v1408
        %1415 = vmatprep.subr.mxu0 0.0
        %1416 = vmatpush1.msra.mxu0 0.0
        %1417 = vmatprep.subr.mxu0 0.0
        %1418 = vmatpush1.msra.mxu0 0.0
        %1419 = vmatprep.subr.mxu0 0.0
        %1420 = vmatpush1.msra.mxu0 0.0
        %1421 = vmatprep.subr.mxu0 0.0
        %1422 = vmatpush1.msra.mxu0 0.0
        %1423 = vmatprep.subr.mxu0 0.0
        %1424 = vmatpush1.msra.mxu0 0.0
        %1425 = vmatprep.subr.mxu0 0.0
        %1426 = vmatpush1.msra.mxu0 0.0
        %1427 = vmatprep.subr.mxu0 0.0
        %1428 = vmatpush1.msra.mxu0 0.0
        %1429 = vmatprep.subr.mxu0 0.0
        %1430 = vmatpush1.msra.mxu0 0.0
        %1431 = vmatprep.subr.mxu0 0.0
        %1432 = vmatpush1.msra.mxu0 0.0
        %1433 = vmatprep.subr.mxu0 0.0
        %1434 = vmatpush1.msra.mxu0 0.0
        %1435 = vmatprep.subr.mxu0 0.0
        %1436 = vmatpush1.msra.mxu0 0.0
        %1437 = vmatprep.subr.mxu0 0.0
        %1438 = vmatpush1.msra.mxu0 0.0
        %1439 = vmatprep.subr.mxu0 0.0
        %1440 = vmatpush1.msra.mxu0 0.0
        %1441 = vmatprep.subr.mxu0 0.0
        %1442 = vmatpush1.msra.mxu0 0.0
        %1443 = vmatprep.subr.mxu0 0.0
        %1444 = vmatpush1.msra.mxu0 0.0
        %1445 = vmatprep.subr.mxu0 0.0
        %1446 = vmatpush1.msra.mxu0 0.0
        %1447 = vmatprep.subr.mxu0 0.0
        %1448 = vmatpush1.msra.mxu0 0.0
        %1449 = vmatprep.subr.mxu0 0.0
        %1450 = vmatpush1.msra.mxu0 0.0
        %1451 = vmatprep.subr.mxu0 0.0
        %1452 = vmatpush1.msra.mxu0 0.0
        %1453 = vmatprep.subr.mxu0 0.0
        %1454 = vmatpush1.msra.mxu0 0.0
        %1455 = vmatprep.subr.mxu0 0.0
        %1456 = vmatpush1.msra.mxu0 0.0
        %1457 = vmatprep.subr.mxu0 0.0
        %1458 = vmatpush1.msra.mxu0 0.0
        %1459 = vmatprep.subr.mxu0 0.0
        %1460 = vmatpush1.msra.mxu0 0.0
        %1461 = vmatprep.subr.mxu0 0.0
        %1462 = vmatpush1.msra.mxu0 0.0
        %1463 = vmatprep.subr.mxu0 0.0
        %1464 = vmatpush1.msra.mxu0 0.0
        %1465 = vmatprep.subr.mxu0 0.0
        %1466 = vmatpush1.msra.mxu0 0.0
        %1467 = vmatprep.subr.mxu0 0.0
        %1468 = vmatpush1.msra.mxu0 0.0
        %1469 = vmatprep.subr.mxu0 0.0
        %1470 = vmatpush1.msra.mxu0 0.0
        %1471 = vmatprep.subr.mxu0 0.0
        %1472 = vmatpush1.msra.mxu0 0.0
        %1473 = vmatprep.subr.mxu0 0.0
        %1474 = vmatpush1.msra.mxu0 0.0
        %1475 = vmatprep.subr.mxu0 0.0
        %1476 = vmatpush1.msra.mxu0 0.0
        %1477 = vmatprep.mubr.f32.mxu0 0.0
        %1478 = vmatmul.mubr.f32.gmra.mrb[0].mxu0 %v1411
        %v1479 = vpop.f32.mrb[0].mxu0
        %v1480 = vadd.f32 0.0, %v1479
        %v1481 = vpop.f32.mrb[0].mxu0
        %1482 = vdwg.mxu0
        %1484 = vrot.lane.b32.xlu0 %v1150, 32
        %v1485 = vpop.permute.xlu0 %1484
        %1488 = vrot.lane.b32.xlu0 %v1315, 64
        %v1489 = vpop.permute.xlu0 %1488
        %1492 = vrot.lane.b32.xlu0 %v1480, 96
        %v1493 = vpop.permute.xlu0 %1492
        %v1495 = vsel %vm825, %v984, %v1485
        %vm1496 = vcmask 523264
        %v1497 = vsel %vm1496, %v1495, %v1489
        %vm1498 = vcmask 785408
        %v1499 = vsel %vm1498, %v1497, %v1493
        %v1500 = vpack.c.bf16 %v1499, %v1499
        %v1501 = vld [vmem:[%s445] sm:$0xf]
        %v1502 = vld [vmem:[%s445 + $0x4] sm:$0xf]
        %v1503 = vld [vmem:[%s445 + $0x8] sm:$0xf]
        %v1504 = vld [vmem:[%s445 + $0xc] sm:$0xf]
        %v1505 = vld [vmem:[%s445 + $0x10] sm:$0xf]
        %v1506 = vld [vmem:[%s445 + $0x14] sm:$0xf]
        %v1507 = vld [vmem:[%s445 + $0x18] sm:$0xf]
        %v1508 = vld [vmem:[%s445 + $0x1c] sm:$0xf]
        %v1509 = vld [vmem:[%s445 + $0x20] sm:$0xf]
        %v1510 = vld [vmem:[%s445 + $0x24] sm:$0xf]
        %v1511 = vld [vmem:[%s445 + $0x28] sm:$0xf]
        %v1512 = vld [vmem:[%s445 + $0x2c] sm:$0xf]
        %v1513 = vld [vmem:[%s445 + $0x30] sm:$0xf]
        %v1514 = vld [vmem:[%s445 + $0x34] sm:$0xf]
        %v1515 = vld [vmem:[%s445 + $0x38] sm:$0xf]
        %v1516 = vld [vmem:[%s445 + $0x3c] sm:$0xf]
        %v1517 = vlaneseq
        %v1518 = vshrl.u32 %v1517, 7
        %v1519 = vsub.s32 4, %v1518
        %v1520 = vrot.slane %v542, %v1519
        %v1537 = vunpack.c.l.b16 %v1501
        %v1538 = vunpack.c.l.b16 %v1502
        %v1539 = vunpack.c.l.b16 %v1503
        %v1540 = vunpack.c.l.b16 %v1504
        %v1541 = vunpack.c.l.b16 %v1505
        %v1542 = vunpack.c.l.b16 %v1506
        %v1543 = vunpack.c.l.b16 %v1507
        %v1544 = vunpack.c.l.b16 %v1508
        %v1545 = vunpack.c.l.b16 %v1509
        %v1546 = vunpack.c.l.b16 %v1510
        %v1547 = vunpack.c.l.b16 %v1511
        %v1548 = vunpack.c.l.b16 %v1512
        %v1549 = vunpack.c.l.b16 %v1513
        %v1550 = vunpack.c.l.b16 %v1514
        %v1551 = vunpack.c.l.b16 %v1515
        %v1552 = vunpack.c.l.b16 %v1516
        %v1553 = vpack.c.b16 %v1538, %v1537
        %v1554 = vpack.c.b16 %v1540, %v1539
        %v1555 = vpack.c.b16 %v1542, %v1541
        %v1556 = vpack.c.b16 %v1544, %v1543
        %v1557 = vpack.c.b16 %v1546, %v1545
        %v1558 = vpack.c.b16 %v1548, %v1547
        %v1559 = vpack.c.b16 %v1550, %v1549
        %v1560 = vpack.c.b16 %v1552, %v1551
        %1569 = vmatprep.subr.bf16.mxu0 0
        %1570 = vmatpush1.bf16.msra.mxu0 %v1553
        %1571 = vmatprep.subr.bf16.mxu0 0
        %1572 = vmatpush1.bf16.msra.mxu0 %v1554
        %1573 = vmatprep.subr.bf16.mxu0 0
        %1574 = vmatpush1.bf16.msra.mxu0 %v1555
        %1575 = vmatprep.subr.bf16.mxu0 0
        %1576 = vmatpush1.bf16.msra.mxu0 %v1556
        %1577 = vmatprep.subr.bf16.mxu0 0
        %1578 = vmatpush1.bf16.msra.mxu0 %v1557
        %1579 = vmatprep.subr.bf16.mxu0 0
        %1580 = vmatpush1.bf16.msra.mxu0 %v1558
        %1581 = vmatprep.subr.bf16.mxu0 0
        %1582 = vmatpush1.bf16.msra.mxu0 %v1559
        %1583 = vmatprep.subr.bf16.mxu0 0
        %1584 = vmatpush1.bf16.msra.mxu0 %v1560
        %1585 = vmatprep.subr.bf16.mxu0 0
        %1586 = vmatpush1.bf16.msra.mxu0 0
        %1587 = vmatprep.subr.bf16.mxu0 0
        %1588 = vmatpush1.bf16.msra.mxu0 0
        %1589 = vmatprep.subr.bf16.mxu0 0
        %1590 = vmatpush1.bf16.msra.mxu0 0
        %1591 = vmatprep.subr.bf16.mxu0 0
        %1592 = vmatpush1.bf16.msra.mxu0 0
        %1593 = vmatprep.subr.bf16.mxu0 0
        %1594 = vmatpush1.bf16.msra.mxu0 0
        %1595 = vmatprep.subr.bf16.mxu0 0
        %1596 = vmatpush1.bf16.msra.mxu0 0
        %1597 = vmatprep.subr.bf16.mxu0 0
        %1598 = vmatpush1.bf16.msra.mxu0 0
        %1599 = vmatprep.subr.bf16.mxu0 0
        %1600 = vmatpush1.bf16.msra.mxu0 0
        %1601 = vmatprep.mubr.bf16.mxu0 0
        %1602 = vmatmul.mubr.bf16.gmra.mrb[0].mxu0 %v1500
        %v1603 = vpop.f32.mrb[0].mxu0
        %v1604 = vadd.f32 %v1520, %v1603
        %v1605 = vpop.f32.mrb[0].mxu0
        %v1606 = vpop.f32.mrb[0].mxu0
        %v1607 = vpop.f32.mrb[0].mxu0
        %1608 = vdwg.mxu0
        %v1609 = vadd.f32 %v541, %v1604
        %1610 = vadd.xlane.f32.xlu0 %v1609
        %v1611 = vpop.xlane.xlu0 %1610
        %v1612 = vmul.f32 %v1611, %v546
        %v1613 = vsub.f32 %v1609, %v1612
        %v1614 = vmul.f32 %v1613, %v1613
        %1615 = vadd.xlane.f32.xlu0 %v1614
        %v1616 = vpop.xlane.xlu0 %1615
        %v1617 = vmul.f32 %v1616, %v546
        %v1618 = vadd.f32 %v1617, 1e-05
        %v1619 = vrsqrt.pop %v1618
        %v1620 = vmul.f32 %v1613, %v1619
        %v1621 = vlaneseq
        %v1622 = vshrl.u32 %v1621, 7
        %v1623 = vsub.s32 2, %v1622
        %v1624 = vrot.slane %v542, %v1623
        %v1625 = vmul.f32 %v1620, %v1624
        %v1626 = vlaneseq
        %v1627 = vshrl.u32 %v1626, 7
        %v1628 = vsub.s32 3, %v1627
        %v1629 = vrot.slane %v542, %v1628
        %v1630 = vadd.f32 %v1625, %v1629
        %v1631 = vpack.c.bf16 %v1630, %v1630
        %v1632 = vld [vmem:[%s454] sm:$0xff]
        %v1633 = vld [vmem:[%s454 + $0x8] sm:$0xff]
        %v1634 = vld [vmem:[%s454 + $0x10] sm:$0xff]
        %v1635 = vld [vmem:[%s454 + $0x18] sm:$0xff]
        %v1636 = vld [vmem:[%s454 + $0x20] sm:$0xff]
        %v1637 = vld [vmem:[%s454 + $0x28] sm:$0xff]
        %v1638 = vld [vmem:[%s454 + $0x30] sm:$0xff]
        %v1639 = vld [vmem:[%s454 + $0x38] sm:$0xff]
        %v1640 = vld [vmem:[%s454 + $0x40] sm:$0xff]
        %v1641 = vld [vmem:[%s454 + $0x48] sm:$0xff]
        %v1642 = vld [vmem:[%s454 + $0x50] sm:$0xff]
        %v1643 = vld [vmem:[%s454 + $0x58] sm:$0xff]
        %v1644 = vld [vmem:[%s454 + $0x60] sm:$0xff]
        %v1645 = vld [vmem:[%s454 + $0x68] sm:$0xff]
        %v1646 = vld [vmem:[%s454 + $0x70] sm:$0xff]
        %v1647 = vld [vmem:[%s454 + $0x78] sm:$0xff]
        %v1648 = vld [vmem:[%s454 + $0x80] sm:$0xff]
        %v1649 = vld [vmem:[%s454 + $0x88] sm:$0xff]
        %v1650 = vld [vmem:[%s454 + $0x90] sm:$0xff]
        %v1651 = vld [vmem:[%s454 + $0x98] sm:$0xff]
        %v1652 = vld [vmem:[%s454 + $0xa0] sm:$0xff]
        %v1653 = vld [vmem:[%s454 + $0xa8] sm:$0xff]
        %v1654 = vld [vmem:[%s454 + $0xb0] sm:$0xff]
        %v1655 = vld [vmem:[%s454 + $0xb8] sm:$0xff]
        %v1656 = vld [vmem:[%s454 + $0xc0] sm:$0xff]
        %v1657 = vld [vmem:[%s454 + $0xc8] sm:$0xff]
        %v1658 = vld [vmem:[%s454 + $0xd0] sm:$0xff]
        %v1659 = vld [vmem:[%s454 + $0xd8] sm:$0xff]
        %v1660 = vld [vmem:[%s454 + $0xe0] sm:$0xff]
        %v1661 = vld [vmem:[%s454 + $0xe8] sm:$0xff]
        %v1662 = vld [vmem:[%s454 + $0xf0] sm:$0xff]
        %v1663 = vld [vmem:[%s454 + $0xf8] sm:$0xff]
        %v1664 = vld [vmem:[%s533] sm:$0xf]
        %v1666 = vlaneseq
        %v1667 = vshrl.u32 %v1666, 7
        %v1668 = vsub.s32 0, %v1667
        %v1669 = vrot.slane %v1664, %v1668
        %v1670 = vlaneseq
        %v1671 = vshrl.u32 %v1670, 7
        %v1672 = vsub.s32 1, %v1671
        %v1673 = vrot.slane %v1664, %v1672
        %v1674 = vlaneseq
        %v1675 = vshrl.u32 %v1674, 7
        %v1676 = vsub.s32 2, %v1675
        %v1677 = vrot.slane %v1664, %v1676
        %v1678 = vlaneseq
        %v1679 = vshrl.u32 %v1678, 7
        %v1680 = vsub.s32 3, %v1679
        %v1681 = vrot.slane %v1664, %v1680
        %v1718 = vunpack.c.l.b16 %v1632
        %v1719 = vunpack.c.h.b16 %v1632
        %v1720 = vunpack.c.l.b16 %v1633
        %v1721 = vunpack.c.h.b16 %v1633
        %v1722 = vunpack.c.l.b16 %v1634
        %v1723 = vunpack.c.h.b16 %v1634
        %v1724 = vunpack.c.l.b16 %v1635
        %v1725 = vunpack.c.h.b16 %v1635
        %v1726 = vunpack.c.l.b16 %v1636
        %v1727 = vunpack.c.h.b16 %v1636
        %v1728 = vunpack.c.l.b16 %v1637
        %v1729 = vunpack.c.h.b16 %v1637
        %v1730 = vunpack.c.l.b16 %v1638
        %v1731 = vunpack.c.h.b16 %v1638
        %v1732 = vunpack.c.l.b16 %v1639
        %v1733 = vunpack.c.h.b16 %v1639
        %v1734 = vunpack.c.l.b16 %v1640
        %v1735 = vunpack.c.h.b16 %v1640
        %v1736 = vunpack.c.l.b16 %v1641
        %v1737 = vunpack.c.h.b16 %v1641
        %v1738 = vunpack.c.l.b16 %v1642
        %v1739 = vunpack.c.h.b16 %v1642
        %v1740 = vunpack.c.l.b16 %v1643
        %v1741 = vunpack.c.h.b16 %v1643
        %v1742 = vunpack.c.l.b16 %v1644
        %v1743 = vunpack.c.h.b16 %v1644
        %v1744 = vunpack.c.l.b16 %v1645
        %v1745 = vunpack.c.h.b16 %v1645
        %v1746 = vunpack.c.l.b16 %v1646
        %v1747 = vunpack.c.h.b16 %v1646
        %v1748 = vunpack.c.l.b16 %v1647
        %v1749 = vunpack.c.h.b16 %v1647
        %v1750 = vunpack.c.l.b16 %v1648
        %v1751 = vunpack.c.h.b16 %v1648
        %v1752 = vunpack.c.l.b16 %v1649
        %v1753 = vunpack.c.h.b16 %v1649
        %v1754 = vunpack.c.l.b16 %v1650
        %v1755 = vunpack.c.h.b16 %v1650
        %v1756 = vunpack.c.l.b16 %v1651
        %v1757 = vunpack.c.h.b16 %v1651
        %v1758 = vunpack.c.l.b16 %v1652
        %v1759 = vunpack.c.h.b16 %v1652
        %v1760 = vunpack.c.l.b16 %v1653
        %v1761 = vunpack.c.h.b16 %v1653
        %v1762 = vunpack.c.l.b16 %v1654
        %v1763 = vunpack.c.h.b16 %v1654
        %v1764 = vunpack.c.l.b16 %v1655
        %v1765 = vunpack.c.h.b16 %v1655
        %v1766 = vunpack.c.l.b16 %v1656
        %v1767 = vunpack.c.h.b16 %v1656
        %v1768 = vunpack.c.l.b16 %v1657
        %v1769 = vunpack.c.h.b16 %v1657
        %v1770 = vunpack.c.l.b16 %v1658
        %v1771 = vunpack.c.h.b16 %v1658
        %v1772 = vunpack.c.l.b16 %v1659
        %v1773 = vunpack.c.h.b16 %v1659
        %v1774 = vunpack.c.l.b16 %v1660
        %v1775 = vunpack.c.h.b16 %v1660
        %v1776 = vunpack.c.l.b16 %v1661
        %v1777 = vunpack.c.h.b16 %v1661
        %v1778 = vunpack.c.l.b16 %v1662
        %v1779 = vunpack.c.h.b16 %v1662
        %v1780 = vunpack.c.l.b16 %v1663
        %v1781 = vunpack.c.h.b16 %v1663
        %v1782 = vpack.c.b16 %v1722, %v1718
        %v1783 = vpack.c.b16 %v1723, %v1719
        %v1784 = vpack.c.b16 %v1724, %v1720
        %v1785 = vpack.c.b16 %v1725, %v1721
        %v1786 = vpack.c.b16 %v1730, %v1726
        %v1787 = vpack.c.b16 %v1731, %v1727
        %v1788 = vpack.c.b16 %v1732, %v1728
        %v1789 = vpack.c.b16 %v1733, %v1729
        %v1790 = vpack.c.b16 %v1738, %v1734
        %v1791 = vpack.c.b16 %v1739, %v1735
        %v1792 = vpack.c.b16 %v1740, %v1736
        %v1793 = vpack.c.b16 %v1741, %v1737
        %v1794 = vpack.c.b16 %v1746, %v1742
        %v1795 = vpack.c.b16 %v1747, %v1743
        %v1796 = vpack.c.b16 %v1748, %v1744
        %v1797 = vpack.c.b16 %v1749, %v1745
        %v1798 = vpack.c.b16 %v1754, %v1750
        %v1799 = vpack.c.b16 %v1755, %v1751
        %v1800 = vpack.c.b16 %v1756, %v1752
        %v1801 = vpack.c.b16 %v1757, %v1753
        %v1802 = vpack.c.b16 %v1762, %v1758
        %v1803 = vpack.c.b16 %v1763, %v1759
        %v1804 = vpack.c.b16 %v1764, %v1760
        %v1805 = vpack.c.b16 %v1765, %v1761
        %v1806 = vpack.c.b16 %v1770, %v1766
        %v1807 = vpack.c.b16 %v1771, %v1767
        %v1808 = vpack.c.b16 %v1772, %v1768
        %v1809 = vpack.c.b16 %v1773, %v1769
        %v1810 = vpack.c.b16 %v1778, %v1774
        %v1811 = vpack.c.b16 %v1779, %v1775
        %v1812 = vpack.c.b16 %v1780, %v1776
        %v1813 = vpack.c.b16 %v1781, %v1777
        %1846 = vmatprep.subr.bf16.mxu0 %v1783
        %1847 = vmatpush1.bf16.msra.mxu0 %v1782
        %1848 = vmatprep.subr.bf16.mxu0 %v1787
        %1849 = vmatpush1.bf16.msra.mxu0 %v1786
        %1850 = vmatprep.subr.bf16.mxu0 %v1791
        %1851 = vmatpush1.bf16.msra.mxu0 %v1790
        %1852 = vmatprep.subr.bf16.mxu0 %v1795
        %1853 = vmatpush1.bf16.msra.mxu0 %v1794
        %1854 = vmatprep.subr.bf16.mxu0 %v1799
        %1855 = vmatpush1.bf16.msra.mxu0 %v1798
        %1856 = vmatprep.subr.bf16.mxu0 %v1803
        %1857 = vmatpush1.bf16.msra.mxu0 %v1802
        %1858 = vmatprep.subr.bf16.mxu0 %v1807
        %1859 = vmatpush1.bf16.msra.mxu0 %v1806
        %1860 = vmatprep.subr.bf16.mxu0 %v1811
        %1861 = vmatpush1.bf16.msra.mxu0 %v1810
        %1862 = vmatprep.subr.bf16.mxu0 0
        %1863 = vmatpush1.bf16.msra.mxu0 0
        %1864 = vmatprep.subr.bf16.mxu0 0
        %1865 = vmatpush1.bf16.msra.mxu0 0
        %1866 = vmatprep.subr.bf16.mxu0 0
        %1867 = vmatpush1.bf16.msra.mxu0 0
        %1868 = vmatprep.subr.bf16.mxu0 0
        %1869 = vmatpush1.bf16.msra.mxu0 0
        %1870 = vmatprep.subr.bf16.mxu0 0
        %1871 = vmatpush1.bf16.msra.mxu0 0
        %1872 = vmatprep.subr.bf16.mxu0 0
        %1873 = vmatpush1.bf16.msra.mxu0 0
        %1874 = vmatprep.subr.bf16.mxu0 0
        %1875 = vmatpush1.bf16.msra.mxu0 0
        %1876 = vmatprep.subr.bf16.mxu0 0
        %1877 = vmatpush1.bf16.msra.mxu0 0
        %1878 = vmatprep.mubr.bf16.mxu0 0
        %1879 = vmatmul.mubr.bf16.gmra.mrb[0].mxu0 %v1631
        %v1880 = vpop.f32.mrb[0].mxu0
        %v1881 = vadd.f32 %v1669, %v1880
        %v1882 = vpop.f32.mrb[0].mxu0
        %v1883 = vadd.f32 %v1673, %v1882
        %v1884 = vpop.f32.mrb[0].mxu0
        %v1885 = vpop.f32.mrb[0].mxu0
        %1886 = vdwg.mxu0
        %1887 = vmatprep.subr.bf16.mxu0 %v1785
        %1888 = vmatpush1.bf16.msra.mxu0 %v1784
        %1889 = vmatprep.subr.bf16.mxu0 %v1789
        %1890 = vmatpush1.bf16.msra.mxu0 %v1788
        %1891 = vmatprep.subr.bf16.mxu0 %v1793
        %1892 = vmatpush1.bf16.msra.mxu0 %v1792
        %1893 = vmatprep.subr.bf16.mxu0 %v1797
        %1894 = vmatpush1.bf16.msra.mxu0 %v1796
        %1895 = vmatprep.subr.bf16.mxu0 %v1801
        %1896 = vmatpush1.bf16.msra.mxu0 %v1800
        %1897 = vmatprep.subr.bf16.mxu0 %v1805
        %1898 = vmatpush1.bf16.msra.mxu0 %v1804
        %1899 = vmatprep.subr.bf16.mxu0 %v1809
        %1900 = vmatpush1.bf16.msra.mxu0 %v1808
        %1901 = vmatprep.subr.bf16.mxu0 %v1813
        %1902 = vmatpush1.bf16.msra.mxu0 %v1812
        %1903 = vmatprep.subr.bf16.mxu0 0
        %1904 = vmatpush1.bf16.msra.mxu0 0
        %1905 = vmatprep.subr.bf16.mxu0 0
        %1906 = vmatpush1.bf16.msra.mxu0 0
        %1907 = vmatprep.subr.bf16.mxu0 0
        %1908 = vmatpush1.bf16.msra.mxu0 0
        %1909 = vmatprep.subr.bf16.mxu0 0
        %1910 = vmatpush1.bf16.msra.mxu0 0
        %1911 = vmatprep.subr.bf16.mxu0 0
        %1912 = vmatpush1.bf16.msra.mxu0 0
        %1913 = vmatprep.subr.bf16.mxu0 0
        %1914 = vmatpush1.bf16.msra.mxu0 0
        %1915 = vmatprep.subr.bf16.mxu0 0
        %1916 = vmatpush1.bf16.msra.mxu0 0
        %1917 = vmatprep.subr.bf16.mxu0 0
        %1918 = vmatpush1.bf16.msra.mxu0 0
        %1919 = vmatprep.mubr.bf16.mxu0 0
        %1920 = vmatmul.mubr.bf16.gmra.mrb[0].mxu0 %v1631
        %v1921 = vpop.f32.mrb[0].mxu0
        %v1922 = vadd.f32 %v1677, %v1921
        %v1923 = vpop.f32.mrb[0].mxu0
        %v1924 = vadd.f32 %v1681, %v1923
        %v1925 = vpop.f32.mrb[0].mxu0
        %v1926 = vpop.f32.mrb[0].mxu0
        %1927 = vdwg.mxu0
        %v1928 = vmul.f32 %v1881, 1.702
        %v1929 = vmul.f32 %v1883, 1.702
        %v1930 = vmul.f32 %v1922, 1.702
        %v1931 = vmul.f32 %v1924, 1.702
        %v1932 = vxor.u32 %v1928, 2147483648
        %v1933 = vxor.u32 %v1929, 2147483648
        %v1934 = vxor.u32 %v1930, 2147483648
        %v1935 = vxor.u32 %v1931, 2147483648
        %v1936 = vmul.f32 %v1932, 1.442695
        %v1937 = vpow.pop %v1936
        %v1938 = vmul.f32 %v1933, 1.442695
        %v1939 = vpow.pop %v1938
        %v1940 = vmul.f32 %v1934, 1.442695
        %v1941 = vpow.pop %v1940
        %v1942 = vmul.f32 %v1935, 1.442695
        %v1943 = vpow.pop %v1942
        %v1944 = vadd.f32 %v1937, 1.0
        %v1945 = vadd.f32 %v1939, 1.0
        %v1946 = vadd.f32 %v1941, 1.0
        %v1947 = vadd.f32 %v1943, 1.0
        %v1948 = vrcp.pop %v1944
        %v1949 = vmul.f32 1.0, %v1948
        %v1950 = vrcp.pop %v1945
        %v1951 = vmul.f32 1.0, %v1950
        %v1952 = vrcp.pop %v1946
        %v1953 = vmul.f32 1.0, %v1952
        %v1954 = vrcp.pop %v1947
        %v1955 = vmul.f32 1.0, %v1954
        %v1956 = vmul.f32 %v1881, %v1949
        %v1957 = vmul.f32 %v1883, %v1951
        %v1958 = vmul.f32 %v1922, %v1953
        %v1959 = vmul.f32 %v1924, %v1955
        %v1960 = vpack.c.bf16 %v1956, %v1956
        %v1961 = vpack.c.bf16 %v1957, %v1957
        %v1962 = vpack.c.bf16 %v1958, %v1958
        %v1963 = vpack.c.bf16 %v1959, %v1959
        %v1964 = vld [vmem:[%s463] sm:$0xf]
        %v1965 = vld [vmem:[%s463 + $0x4] sm:$0xf]
        %v1966 = vld [vmem:[%s463 + $0x8] sm:$0xf]
        %v1967 = vld [vmem:[%s463 + $0xc] sm:$0xf]
        %v1968 = vld [vmem:[%s463 + $0x10] sm:$0xf]
        %v1969 = vld [vmem:[%s463 + $0x14] sm:$0xf]
        %v1970 = vld [vmem:[%s463 + $0x18] sm:$0xf]
        %v1971 = vld [vmem:[%s463 + $0x1c] sm:$0xf]
        %v1972 = vld [vmem:[%s463 + $0x20] sm:$0xf]
        %v1973 = vld [vmem:[%s463 + $0x24] sm:$0xf]
        %v1974 = vld [vmem:[%s463 + $0x28] sm:$0xf]
        %v1975 = vld [vmem:[%s463 + $0x2c] sm:$0xf]
        %v1976 = vld [vmem:[%s463 + $0x30] sm:$0xf]
        %v1977 = vld [vmem:[%s463 + $0x34] sm:$0xf]
        %v1978 = vld [vmem:[%s463 + $0x38] sm:$0xf]
        %v1979 = vld [vmem:[%s463 + $0x3c] sm:$0xf]
        %v1980 = vld [vmem:[%s463 + $0x40] sm:$0xf]
        %v1981 = vld [vmem:[%s463 + $0x44] sm:$0xf]
        %v1982 = vld [vmem:[%s463 + $0x48] sm:$0xf]
        %v1983 = vld [vmem:[%s463 + $0x4c] sm:$0xf]
        %v1984 = vld [vmem:[%s463 + $0x50] sm:$0xf]
        %v1985 = vld [vmem:[%s463 + $0x54] sm:$0xf]
        %v1986 = vld [vmem:[%s463 + $0x58] sm:$0xf]
        %v1987 = vld [vmem:[%s463 + $0x5c] sm:$0xf]
        %v1988 = vld [vmem:[%s463 + $0x60] sm:$0xf]
        %v1989 = vld [vmem:[%s463 + $0x64] sm:$0xf]
        %v1990 = vld [vmem:[%s463 + $0x68] sm:$0xf]
        %v1991 = vld [vmem:[%s463 + $0x6c] sm:$0xf]
        %v1992 = vld [vmem:[%s463 + $0x70] sm:$0xf]
        %v1993 = vld [vmem:[%s463 + $0x74] sm:$0xf]
        %v1994 = vld [vmem:[%s463 + $0x78] sm:$0xf]
        %v1995 = vld [vmem:[%s463 + $0x7c] sm:$0xf]
        %v1996 = vld [vmem:[%s463 + $0x80] sm:$0xf]
        %v1997 = vld [vmem:[%s463 + $0x84] sm:$0xf]
        %v1998 = vld [vmem:[%s463 + $0x88] sm:$0xf]
        %v1999 = vld [vmem:[%s463 + $0x8c] sm:$0xf]
        %v2000 = vld [vmem:[%s463 + $0x90] sm:$0xf]
        %v2001 = vld [vmem:[%s463 + $0x94] sm:$0xf]
        %v2002 = vld [vmem:[%s463 + $0x98] sm:$0xf]
        %v2003 = vld [vmem:[%s463 + $0x9c] sm:$0xf]
        %v2004 = vld [vmem:[%s463 + $0xa0] sm:$0xf]
        %v2005 = vld [vmem:[%s463 + $0xa4] sm:$0xf]
        %v2006 = vld [vmem:[%s463 + $0xa8] sm:$0xf]
        %v2007 = vld [vmem:[%s463 + $0xac] sm:$0xf]
        %v2008 = vld [vmem:[%s463 + $0xb0] sm:$0xf]
        %v2009 = vld [vmem:[%s463 + $0xb4] sm:$0xf]
        %v2010 = vld [vmem:[%s463 + $0xb8] sm:$0xf]
        %v2011 = vld [vmem:[%s463 + $0xbc] sm:$0xf]
        %v2012 = vld [vmem:[%s463 + $0xc0] sm:$0xf]
        %v2013 = vld [vmem:[%s463 + $0xc4] sm:$0xf]
        %v2014 = vld [vmem:[%s463 + $0xc8] sm:$0xf]
        %v2015 = vld [vmem:[%s463 + $0xcc] sm:$0xf]
        %v2016 = vld [vmem:[%s463 + $0xd0] sm:$0xf]
        %v2017 = vld [vmem:[%s463 + $0xd4] sm:$0xf]
        %v2018 = vld [vmem:[%s463 + $0xd8] sm:$0xf]
        %v2019 = vld [vmem:[%s463 + $0xdc] sm:$0xf]
        %v2020 = vld [vmem:[%s463 + $0xe0] sm:$0xf]
        %v2021 = vld [vmem:[%s463 + $0xe4] sm:$0xf]
        %v2022 = vld [vmem:[%s463 + $0xe8] sm:$0xf]
        %v2023 = vld [vmem:[%s463 + $0xec] sm:$0xf]
        %v2024 = vld [vmem:[%s463 + $0xf0] sm:$0xf]
        %v2025 = vld [vmem:[%s463 + $0xf4] sm:$0xf]
        %v2026 = vld [vmem:[%s463 + $0xf8] sm:$0xf]
        %v2027 = vld [vmem:[%s463 + $0xfc] sm:$0xf]
        %v2028 = vlaneseq
        %v2029 = vshrl.u32 %v2028, 7
        %v2030 = vsub.s32 5, %v2029
        %v2031 = vrot.slane %v542, %v2030
        %v2096 = vunpack.c.l.b16 %v1964
        %v2097 = vunpack.c.l.b16 %v1965
        %v2098 = vunpack.c.l.b16 %v1966
        %v2099 = vunpack.c.l.b16 %v1967
        %v2100 = vunpack.c.l.b16 %v1968
        %v2101 = vunpack.c.l.b16 %v1969
        %v2102 = vunpack.c.l.b16 %v1970
        %v2103 = vunpack.c.l.b16 %v1971
        %v2104 = vunpack.c.l.b16 %v1972
        %v2105 = vunpack.c.l.b16 %v1973
        %v2106 = vunpack.c.l.b16 %v1974
        %v2107 = vunpack.c.l.b16 %v1975
        %v2108 = vunpack.c.l.b16 %v1976
        %v2109 = vunpack.c.l.b16 %v1977
        %v2110 = vunpack.c.l.b16 %v1978
        %v2111 = vunpack.c.l.b16 %v1979
        %v2112 = vunpack.c.l.b16 %v1980
        %v2113 = vunpack.c.l.b16 %v1981
        %v2114 = vunpack.c.l.b16 %v1982
        %v2115 = vunpack.c.l.b16 %v1983
        %v2116 = vunpack.c.l.b16 %v1984
        %v2117 = vunpack.c.l.b16 %v1985
        %v2118 = vunpack.c.l.b16 %v1986
        %v2119 = vunpack.c.l.b16 %v1987
        %v2120 = vunpack.c.l.b16 %v1988
        %v2121 = vunpack.c.l.b16 %v1989
        %v2122 = vunpack.c.l.b16 %v1990
        %v2123 = vunpack.c.l.b16 %v1991
        %v2124 = vunpack.c.l.b16 %v1992
        %v2125 = vunpack.c.l.b16 %v1993
        %v2126 = vunpack.c.l.b16 %v1994
        %v2127 = vunpack.c.l.b16 %v1995
        %v2128 = vunpack.c.l.b16 %v1996
        %v2129 = vunpack.c.l.b16 %v1997
        %v2130 = vunpack.c.l.b16 %v1998
        %v2131 = vunpack.c.l.b16 %v1999
        %v2132 = vunpack.c.l.b16 %v2000
        %v2133 = vunpack.c.l.b16 %v2001
        %v2134 = vunpack.c.l.b16 %v2002
        %v2135 = vunpack.c.l.b16 %v2003
        %v2136 = vunpack.c.l.b16 %v2004
        %v2137 = vunpack.c.l.b16 %v2005
        %v2138 = vunpack.c.l.b16 %v2006
        %v2139 = vunpack.c.l.b16 %v2007
        %v2140 = vunpack.c.l.b16 %v2008
        %v2141 = vunpack.c.l.b16 %v2009
        %v2142 = vunpack.c.l.b16 %v2010
        %v2143 = vunpack.c.l.b16 %v2011
        %v2144 = vunpack.c.l.b16 %v2012
        %v2145 = vunpack.c.l.b16 %v2013
        %v2146 = vunpack.c.l.b16 %v2014
        %v2147 = vunpack.c.l.b16 %v2015
        %v2148 = vunpack.c.l.b16 %v2016
        %v2149 = vunpack.c.l.b16 %v2017
        %v2150 = vunpack.c.l.b16 %v2018
        %v2151 = vunpack.c.l.b16 %v2019
        %v2152 = vunpack.c.l.b16 %v2020
        %v2153 = vunpack.c.l.b16 %v2021
        %v2154 = vunpack.c.l.b16 %v2022
        %v2155 = vunpack.c.l.b16 %v2023
        %v2156 = vunpack.c.l.b16 %v2024
        %v2157 = vunpack.c.l.b16 %v2025
        %v2158 = vunpack.c.l.b16 %v2026
        %v2159 = vunpack.c.l.b16 %v2027
        %v2160 = vpack.c.b16 %v2097, %v2096
        %v2161 = vpack.c.b16 %v2099, %v2098
        %v2162 = vpack.c.b16 %v2101, %v2100
        %v2163 = vpack.c.b16 %v2103, %v2102
        %v2164 = vpack.c.b16 %v2105, %v2104
        %v2165 = vpack.c.b16 %v2107, %v2106
        %v2166 = vpack.c.b16 %v2109, %v2108
        %v2167 = vpack.c.b16 %v2111, %v2110
        %v2168 = vpack.c.b16 %v2113, %v2112
        %v2169 = vpack.c.b16 %v2115, %v2114
        %v2170 = vpack.c.b16 %v2117, %v2116
        %v2171 = vpack.c.b16 %v2119, %v2118
        %v2172 = vpack.c.b16 %v2121, %v2120
        %v2173 = vpack.c.b16 %v2123, %v2122
        %v2174 = vpack.c.b16 %v2125, %v2124
        %v2175 = vpack.c.b16 %v2127, %v2126
        %v2176 = vpack.c.b16 %v2129, %v2128
        %v2177 = vpack.c.b16 %v2131, %v2130
        %v2178 = vpack.c.b16 %v2133, %v2132
        %v2179 = vpack.c.b16 %v2135, %v2134
        %v2180 = vpack.c.b16 %v2137, %v2136
        %v2181 = vpack.c.b16 %v2139, %v2138
        %v2182 = vpack.c.b16 %v2141, %v2140
        %v2183 = vpack.c.b16 %v2143, %v2142
        %v2184 = vpack.c.b16 %v2145, %v2144
        %v2185 = vpack.c.b16 %v2147, %v2146
        %v2186 = vpack.c.b16 %v2149, %v2148
        %v2187 = vpack.c.b16 %v2151, %v2150
        %v2188 = vpack.c.b16 %v2153, %v2152
        %v2189 = vpack.c.b16 %v2155, %v2154
        %v2190 = vpack.c.b16 %v2157, %v2156
        %v2191 = vpack.c.b16 %v2159, %v2158
        %2224 = vmatprep.subr.bf16.mxu0 0
        %2225 = vmatpush1.bf16.msra.mxu0 %v2160
        %2226 = vmatprep.subr.bf16.mxu0 0
        %2227 = vmatpush1.bf16.msra.mxu0 %v2161
        %2228 = vmatprep.subr.bf16.mxu0 0
        %2229 = vmatpush1.bf16.msra.mxu0 %v2162
        %2230 = vmatprep.subr.bf16.mxu0 0
        %2231 = vmatpush1.bf16.msra.mxu0 %v2163
        %2232 = vmatprep.subr.bf16.mxu0 0
        %2233 = vmatpush1.bf16.msra.mxu0 %v2164
        %2234 = vmatprep.subr.bf16.mxu0 0
        %2235 = vmatpush1.bf16.msra.mxu0 %v2165
        %2236 = vmatprep.subr.bf16.mxu0 0
        %2237 = vmatpush1.bf16.msra.mxu0 %v2166
        %2238 = vmatprep.subr.bf16.mxu0 0
        %2239 = vmatpush1.bf16.msra.mxu0 %v2167
        %2240 = vmatprep.subr.bf16.mxu0 0
        %2241 = vmatpush1.bf16.msra.mxu0 %v2168
        %2242 = vmatprep.subr.bf16.mxu0 0
        %2243 = vmatpush1.bf16.msra.mxu0 %v2169
        %2244 = vmatprep.subr.bf16.mxu0 0
        %2245 = vmatpush1.bf16.msra.mxu0 %v2170
        %2246 = vmatprep.subr.bf16.mxu0 0
        %2247 = vmatpush1.bf16.msra.mxu0 %v2171
        %2248 = vmatprep.subr.bf16.mxu0 0
        %2249 = vmatpush1.bf16.msra.mxu0 %v2172
        %2250 = vmatprep.subr.bf16.mxu0 0
        %2251 = vmatpush1.bf16.msra.mxu0 %v2173
        %2252 = vmatprep.subr.bf16.mxu0 0
        %2253 = vmatpush1.bf16.msra.mxu0 %v2174
        %2254 = vmatprep.subr.bf16.mxu0 0
        %2255 = vmatpush1.bf16.msra.mxu0 %v2175
        %2256 = vmatprep.mubr.bf16.mxu0 %v1961
        %2257 = vmatmul.mubr.bf16.gmra.mrb[0].mxu0 %v1960
        %v2258 = vpop.f32.mrb[0].mxu0
        %v2259 = vadd.f32 %v2031, %v2258
        %v2260 = vpop.f32.mrb[0].mxu0
        %v2261 = vpop.f32.mrb[0].mxu0
        %v2262 = vpop.f32.mrb[0].mxu0
        %2263 = vdwg.mxu0
        %2264 = vmatprep.subr.bf16.mxu0 0
        %2265 = vmatpush1.bf16.msra.mxu0 %v2176
        %2266 = vmatprep.subr.bf16.mxu0 0
        %2267 = vmatpush1.bf16.msra.mxu0 %v2177
        %2268 = vmatprep.subr.bf16.mxu0 0
        %2269 = vmatpush1.bf16.msra.mxu0 %v2178
        %2270 = vmatprep.subr.bf16.mxu0 0
        %2271 = vmatpush1.bf16.msra.mxu0 %v2179
        %2272 = vmatprep.subr.bf16.mxu0 0
        %2273 = vmatpush1.bf16.msra.mxu0 %v2180
        %2274 = vmatprep.subr.bf16.mxu0 0
        %2275 = vmatpush1.bf16.msra.mxu0 %v2181
        %2276 = vmatprep.subr.bf16.mxu0 0
        %2277 = vmatpush1.bf16.msra.mxu0 %v2182
        %2278 = vmatprep.subr.bf16.mxu0 0
        %2279 = vmatpush1.bf16.msra.mxu0 %v2183
        %2280 = vmatprep.subr.bf16.mxu0 0
        %2281 = vmatpush1.bf16.msra.mxu0 %v2184
        %2282 = vmatprep.subr.bf16.mxu0 0
        %2283 = vmatpush1.bf16.msra.mxu0 %v2185
        %2284 = vmatprep.subr.bf16.mxu0 0
        %2285 = vmatpush1.bf16.msra.mxu0 %v2186
        %2286 = vmatprep.subr.bf16.mxu0 0
        %2287 = vmatpush1.bf16.msra.mxu0 %v2187
        %2288 = vmatprep.subr.bf16.mxu0 0
        %2289 = vmatpush1.bf16.msra.mxu0 %v2188
        %2290 = vmatprep.subr.bf16.mxu0 0
        %2291 = vmatpush1.bf16.msra.mxu0 %v2189
        %2292 = vmatprep.subr.bf16.mxu0 0
        %2293 = vmatpush1.bf16.msra.mxu0 %v2190
        %2294 = vmatprep.subr.bf16.mxu0 0
        %2295 = vmatpush1.bf16.msra.mxu0 %v2191
        %2296 = vmatprep.mubr.bf16.mxu0 %v1963
        %2297 = vmatmul.mubr.bf16.gmra.mrb[0].mxu0 %v1962
        %v2298 = vpop.f32.mrb[0].mxu0
        %v2299 = vadd.f32 %v2259, %v2298
        %v2300 = vpop.f32.mrb[0].mxu0
        %v2301 = vpop.f32.mrb[0].mxu0
        %v2302 = vpop.f32.mrb[0].mxu0
        %2303 = vdwg.mxu0
        %v2304 = vadd.f32 %v1609, %v2299
        %2305 = vst [vmem:[#allocation2] sm:$0xff] %v2304
        %p2306 = scmp.eq.s32.totalorder %s31, 1
        // Predicated region
        $region81: #{tpu_custom_call.1} parent=59 // pred_check
          %p2307 = pneg %p2306
        $region82: #{tpu_custom_call.1} parent=59 // pred_check_branch
          %2309 = sbr.rel (%p2307) target = $region84
        $region83: #{tpu_custom_call.1} parent=59 // pred_region
          %v2310 = vld [vmem:[%s2] sm:$0x3]
          %2311 = vadd.xlane.f32.xlu0 %v2304
          %v2312 = vpop.xlane.xlu0 %2311
          %v2313 = vmul.f32 %v2312, %v546
          %v2314 = vsub.f32 %v2304, %v2313
          %v2315 = vmul.f32 %v2314, %v2314
          %2316 = vadd.xlane.f32.xlu0 %v2315
          %v2317 = vpop.xlane.xlu0 %2316
          %v2318 = vmul.f32 %v2317, %v546
          %v2319 = vadd.f32 %v2318, 1e-05
          %v2320 = vrsqrt.pop %v2319
          %v2321 = vmul.f32 %v2314, %v2320
          %v2322 = vlaneseq
          %v2323 = vshrl.u32 %v2322, 7
          %v2324 = vsub.s32 0, %v2323
          %v2325 = vrot.slane %v2310, %v2324
          %v2326 = vmul.f32 %v2321, %v2325
          %v2327 = vlaneseq
          %v2328 = vshrl.u32 %v2327, 7
          %v2329 = vsub.s32 1, %v2328
          %v2330 = vrot.slane %v2310, %v2329
          %v2331 = vadd.f32 %v2326, %v2330
          %2332 = vst [vmem:[#allocation11] sm:$0xff] %v2331
        $region84: #{tpu_custom_call.1} parent=59 // pred_fallthru
          _
        // Predicated region
        $region85: #{tpu_custom_call.1} parent=59 // pred_check
          %p2333 = pneg %p289
        $region86: #{tpu_custom_call.1} parent=59 // pred_check_branch
          %2335 = sbr.rel (%p2333) target = $region88
        $region87: #{tpu_custom_call.1} parent=59 // pred_region
          %s2337 = ssub.s32 128, 128
          %2338 = vsyncadd [#allocation5], %s2337
          %s2340 = sshll.u32 [#allocation11], 4
          %s2341 = int_to_ptr.vmem [resolvable:$true] %s2340
          %2343 = dma.vmem_to_hbm [thread:$0]  %s2341, 128, %s10, [#allocation5]
        $region88: #{tpu_custom_call.1} parent=59 // pred_fallthru
          _
        // Predicated region
        $region89: #{tpu_custom_call.1} parent=59 // pred_check
          %p2344 = pneg %p289
        $region90: #{tpu_custom_call.1} parent=59 // pred_check_branch
          %2346 = sbr.rel (%p2344) target = $region92
        $region91: #{tpu_custom_call.1} parent=59 // pred_region
          %2347 = dma.done [#allocation5], 128
        $region92: #{tpu_custom_call.1} parent=59 // pred_fallthru
          _
      $region60: #{tpu_custom_call.1} parent=5 // pred_fallthru
        _
      %p2348 = scmp.le.s32.totalorder 2, %s26
      // Predicated region
      $region93: #{tpu_custom_call.1} parent=5 // pred_check
        %p2349 = pneg %p2348
      $region94: #{tpu_custom_call.1} parent=5 // pred_check_branch
        %2351 = sbr.rel (%p2349) target = $region96
      $region95: #{tpu_custom_call.1} parent=5 // pred_region
        %s2352 = ssub.s32 %s26, 2
      $region96: #{tpu_custom_call.1} parent=5 // pred_fallthru
        _
    $region6: #{tpu_custom_call.1} parent=1 // loop_footer
      %s30 = sadd.s32 1, %s26
    $region7: #{tpu_custom_call.1} parent=1 // loop_footer_branch
      %25 = sbr.rel target = $region3
    $region8: #{tpu_custom_call.1} parent=1 // loop_exit
      _
    %2353 = vsyncpa [#allocation4], 1
    %s2354 = scalar_lea.sflag [#allocation4], 1
    %2355 = vsyncpa %s2354, 1
    %2356 = vsyncpa [#allocation7], 1
    %s2357 = scalar_lea.sflag [#allocation7], 1
    %2358 = vsyncpa %s2357, 1
    %2359 = vsyncpa [#allocation10], 1
    %s2360 = scalar_lea.sflag [#allocation10], 1
    %2361 = vsyncpa %s2360, 1
    %2362 = vsyncpa [#allocation5], 1
    %s2363 = scalar_lea.sflag [#allocation5], 1
    %2364 = vsyncpa %s2363, 1

</llo_original>
